<compile_context>
chip_gen: v7x
topology: tpu7x:2x2x1
jax: 0.10.0
libtpu: 0.0.40
codegen_flags: <defaults>
</compile_context>

<pallas_src>
import functools

import jax
import jax.numpy as jnp
from jax.experimental import pallas as pl
from jax.experimental.pallas import tpu as pltpu


# MXU operand dtype (accumulation and epilogue stay in f32).
MATMUL_DTYPE = jnp.bfloat16

# Explicit scoped-VMEM budget (safe on v5e/v6e's 128 MiB and v7x's 64 MiB;
# the tiles used here need well under 1 MiB).
_VMEM_LIMIT_BYTES = 32 * 1024 * 1024


def _round_up(x, m):
    return ((x + m - 1) // m) * m


def _choose_tm(m, cout):
    # Lane-sparse outputs (Cout < 128) -> keep TM <= 256 so the (TM, Cout)
    # f32 accumulator stays well inside the 64-vreg file; lane-dense outputs
    # can use bigger tiles to amortize the ~0.35us/step grid overhead.
    cap = 512 if cout >= 128 else 256
    return min(cap, _round_up(m, 8))


def _compiler_params():
    return pltpu.CompilerParams(
        dimension_semantics=("parallel",),
        vmem_limit_bytes=_VMEM_LIMIT_BYTES,
    )


# ----------------------------------------------------------------------------
# Pallas kernels
# ----------------------------------------------------------------------------
def _conv_bn_kernel(*refs, apply_relu, has_residual):
    """Single-matmul conv (K = 9*Cin) + BN scale/shift + residual + ReLU.

    refs = (patches, weights, scale, shift, [residual], out)
      patches : (TM, 9*Cin)  VMEM (bf16)
      weights : (9*Cin, Cout) VMEM (bf16)
      scale   : (1, Cout)    VMEM (f32)
      shift   : (1, Cout)    VMEM (f32)
      residual: (TM, Cout)   VMEM (optional)
      out     : (TM, Cout)   VMEM
    """
    if has_residual:
        patch_ref, w_ref, scale_ref, shift_ref, res_ref, out_ref = refs
    else:
        patch_ref, w_ref, scale_ref, shift_ref, out_ref = refs
        res_ref = None

    acc = jnp.dot(patch_ref[...], w_ref[...], preferred_element_type=jnp.float32)
    y = acc * scale_ref[...] + shift_ref[...]
    if res_ref is not None:
        y = y + res_ref[...].astype(jnp.float32)
    if apply_relu:
        y = jnp.maximum(y, 0.0)
    out_ref[...] = y.astype(out_ref.dtype)


def _maxpool_kernel(a_ref, b_ref, c_ref, d_ref, out_ref):
    """2x2 max pooling: elementwise max of the 4 window taps."""
    out_ref[...] = jnp.maximum(
        jnp.maximum(a_ref[...], b_ref[...]),
        jnp.maximum(c_ref[...], d_ref[...]),
    )


# ----------------------------------------------------------------------------
# Wrappers (padding, tap extraction, BN folding, tiling)
# ----------------------------------------------------------------------------
def conv3x3_bn(x_nhwc, w_oihw, bias, gamma, beta, rmean, rvar, *, stride,
               relu, residual=None, eps=1e-5):
    """3x3 conv (padding=1, given stride) + BN (+residual) (+ReLU), NHWC."""
    B, H, W, Cin = x_nhwc.shape
    Cout = w_oihw.shape[0]
    Ho = (H + 2 - 3) // stride + 1
    Wo = (W + 2 - 3) // stride + 1
    M = B * Ho * Wo
    K = 9 * Cin

    # im2col with all 9 taps concatenated along the lane/K axis -> ONE
    # (TM, 9*Cin) x (9*Cin, Cout) MXU matmul per tile instead of 9 tiny
    # K=Cin matmuls.
    # TODO(synk): extract the 9 taps inside the kernel from a halo'd NHWC tile
    # (manual DMA / pl.ANY) to avoid materializing the (M, 9*Cin) patch tensor
    # in HBM.
    xp = jnp.pad(x_nhwc, ((0, 0), (1, 1), (1, 1), (0, 0)))
    taps = []
    for kh in range(3):
        for kw in range(3):
            taps.append(
                xp[:, kh:kh + stride * (Ho - 1) + 1:stride,
                      kw:kw + stride * (Wo - 1) + 1:stride, :].reshape(M, Cin)
            )
    patches = jnp.concatenate(taps, axis=-1).astype(MATMUL_DTYPE)  # (M, K)

    # PyTorch conv weight (Cout, Cin, 3, 3) -> (kh, kw, Cin, Cout) -> (K, Cout)
    # (ordering matches the tap concatenation above).
    w_mat = jnp.transpose(w_oihw, (2, 3, 1, 0)).reshape(K, Cout)
    w_mat = w_mat.astype(MATMUL_DTYPE)

    # Fold conv bias + eval-mode BN into a per-channel f32 scale/shift.
    scale = (gamma / jnp.sqrt(rvar + eps)).astype(jnp.float32)
    shift = (beta + scale * (bias - rmean)).astype(jnp.float32)
    scale2 = scale.reshape(1, Cout)
    shift2 = shift.reshape(1, Cout)

    TM = _choose_tm(M, Cout)
    grid_m = pl.cdiv(M, TM)
    Mp = grid_m * TM
    if Mp != M:  # zero-padded tail tile instead of one giant un-pipelined block
        patches = jnp.pad(patches, ((0, Mp - M), (0, 0)))

    in_specs = [
        pl.BlockSpec((TM, K), lambda i: (i, 0)),
        pl.BlockSpec((K, Cout), lambda i: (0, 0)),
        pl.BlockSpec((1, Cout), lambda i: (0, 0)),
        pl.BlockSpec((1, Cout), lambda i: (0, 0)),
    ]
    args = [patches, w_mat, scale2, shift2]
    if residual is not None:
        res2 = residual.reshape(M, Cout)
        if Mp != M:
            res2 = jnp.pad(res2, ((0, Mp - M), (0, 0)))
        in_specs.append(pl.BlockSpec((TM, Cout), lambda i: (i, 0)))
        args.append(res2)

    kernel = functools.partial(
        _conv_bn_kernel, apply_relu=relu, has_residual=residual is not None)

    out = pl.pallas_call(
        kernel,
        out_shape=jax.ShapeDtypeStruct((Mp, Cout), x_nhwc.dtype),
        grid=(grid_m,),
        in_specs=in_specs,
        out_specs=pl.BlockSpec((TM, Cout), lambda i: (i, 0)),
        compiler_params=_compiler_params(),
    )(*args)
    # TODO(synk): for real channel counts pad/tile Cout to multiples of 128 and
    # add a Cout grid axis for fully lane-dense (unmasked) stores.
    return out[:M].reshape(B, Ho, Wo, Cout)


def maxpool2x2(x_nhwc):
    B, H, W, C = x_nhwc.shape
    Ho, Wo = H // 2, W // 2
    M = B * Ho * Wo

    # Four 2x2-window taps passed as separate (M, C) operands (no (4, M, C)
    # stacked tensor).
    # TODO(synk): fuse the 2x2 max into the preceding conv epilogue to avoid
    # this HBM round-trip entirely.
    wins = [x_nhwc[:, dh::2, dw::2, :].reshape(M, C)
            for dh in range(2) for dw in range(2)]

    TM = _choose_tm(M, C)
    grid_m = pl.cdiv(M, TM)
    Mp = grid_m * TM
    if Mp != M:
        wins = [jnp.pad(w, ((0, Mp - M), (0, 0))) for w in wins]

    out = pl.pallas_call(
        _maxpool_kernel,
        out_shape=jax.ShapeDtypeStruct((Mp, C), x_nhwc.dtype),
        grid=(grid_m,),
        in_specs=[pl.BlockSpec((TM, C), lambda i: (i, 0))] * 4,
        out_specs=pl.BlockSpec((TM, C), lambda i: (i, 0)),
        compiler_params=_compiler_params(),
    )(*wins)
    return out[:M].reshape(B, Ho, Wo, C)


# ----------------------------------------------------------------------------
# Resnet2 module: parameters + forward
# ----------------------------------------------------------------------------
def init_resnet2_params(key, in_channel, out_channel):
    k1, k2, k3 = jax.random.split(key, 3)

    def kaiming_fan_out(k, shape):
        fan_out = shape[0] * shape[2] * shape[3]  # Cout * kh * kw
        std = (2.0 / fan_out) ** 0.5
        return std * jax.random.normal(k, shape, jnp.float32)

    def bn(c):
        return dict(
            gamma=jnp.ones((c,), jnp.float32),
            beta=jnp.zeros((c,), jnp.float32),
            rmean=jnp.zeros((c,), jnp.float32),
            rvar=jnp.ones((c,), jnp.float32),
        )

    return dict(
        l1_conv1_w=kaiming_fan_out(k1, (out_channel, in_channel, 3, 3)),
        l1_conv1_b=jnp.zeros((out_channel,), jnp.float32),
        l1_bn1=bn(out_channel),
        l1_conv2_w=kaiming_fan_out(k2, (out_channel, out_channel, 3, 3)),
        l1_conv2_b=jnp.zeros((out_channel,), jnp.float32),
        l1_bn2=bn(out_channel),
        l2_conv_w=kaiming_fan_out(k3, (out_channel, in_channel, 3, 3)),
        l2_conv_b=jnp.zeros((out_channel,), jnp.float32),
        l2_bn=bn(out_channel),
    )


def resnet2_forward(x_nchw, p):
    """Forward pass matching Resnet2.forward. Input NCHW, output NCHW."""
    x = jnp.transpose(x_nchw, (0, 2, 3, 1))  # NCHW -> NHWC

    # layer2 (identity branch): conv(stride=2) + BN + ReLU
    identity = conv3x3_bn(
        x, p["l2_conv_w"], p["l2_conv_b"], **p["l2_bn"], stride=2, relu=True,
    )

    # layer1: conv + BN + ReLU
    h = conv3x3_bn(
        x, p["l1_conv1_w"], p["l1_conv1_b"], **p["l1_bn1"], stride=1, relu=True,
    )
    # MaxPool 2x2
    h = maxpool2x2(h)
    # conv + BN, then fused residual add + final ReLU
    out = conv3x3_bn(
        h, p["l1_conv2_w"], p["l1_conv2_b"], **p["l1_bn2"], stride=1,
        relu=True, residual=identity,
    )
    return jnp.transpose(out, (0, 3, 1, 2))  # NHWC -> NCHW


# ----------------------------------------------------------------------------
if __name__ == "__main__":
    key = jax.random.PRNGKey(0)
    kx, kp = jax.random.split(key)

    B, Cin, H, W = 2, 4, 16, 16
    Cout = 8

    x = jax.random.normal(kx, (B, Cin, H, W), jnp.float32)
    params = init_resnet2_params(kp, Cin, Cout)

    y = jax.jit(resnet2_forward)(x, params)
    jax.block_until_ready(y)

    assert y.shape == (B, Cout, H // 2, W // 2), y.shape
    assert bool(jnp.all(y >= 0.0))  # final ReLU
    print("KERNEL_OK")
</pallas_src>

<mosaic_0001>
module attributes {stable_mosaic.version = 11 : i64} {
  func.func @_conv_bn_kernel(%arg0: i32, %arg1: memref<256x36xbf16, #tpu.memory_space<vmem>>, %arg2: memref<36x8xbf16, #tpu.memory_space<vmem>>, %arg3: memref<1x8xf32, #tpu.memory_space<vmem>>, %arg4: memref<1x8xf32, #tpu.memory_space<vmem>>, %arg5: memref<256x8xf32, #tpu.memory_space<vmem>>) attributes {dimension_semantics = [#tpu.dimension_semantics<parallel>], iteration_bounds = array<i64: 2>, scalar_prefetch = 0 : i64, scratch_operands = 0 : i64, tpu.core_type = #tpu.core_type<tc>, window_params = [{transform_indices = @transform_0, window_bounds = array<i64: 256, 36>}, {pipeline_mode = #tpu.pipeline_mode<synchronous>, transform_indices = @transform_1, window_bounds = array<i64: 36, 8>}, {pipeline_mode = #tpu.pipeline_mode<synchronous>, transform_indices = @transform_2, window_bounds = array<i64: 1, 8>}, {pipeline_mode = #tpu.pipeline_mode<synchronous>, transform_indices = @transform_3, window_bounds = array<i64: 1, 8>}, {transform_indices = @transform_4, window_bounds = array<i64: 256, 8>}]} {
    %c0 = arith.constant 0 : index
    %c0_0 = arith.constant 0 : index
    %0 = vector.load %arg1[%c0, %c0_0] : memref<256x36xbf16, #tpu.memory_space<vmem>>, vector<256x36xbf16>
    %c0_1 = arith.constant 0 : index
    %c0_2 = arith.constant 0 : index
    %1 = vector.load %arg2[%c0_1, %c0_2] : memref<36x8xbf16, #tpu.memory_space<vmem>>, vector<36x8xbf16>
    %cst = arith.constant dense<0.000000e+00> : vector<256x8xf32>
    %2 = tpu.matmul %0, %1, %cst {dimension_numbers = #tpu.dot_dimension_numbers<[1], [0], [0], [1], [0, 0, 1, 1], [], []>} : vector<256x36xbf16>, vector<36x8xbf16>, vector<256x8xf32> -> vector<256x8xf32>
    %c0_3 = arith.constant 0 : index
    %c0_4 = arith.constant 0 : index
    %3 = vector.load %arg3[%c0_3, %c0_4] : memref<1x8xf32, #tpu.memory_space<vmem>>, vector<1x8xf32>
    %4 = vector.broadcast %3 : vector<1x8xf32> to vector<256x8xf32>
    %5 = arith.mulf %2, %4 : vector<256x8xf32>
    %c0_5 = arith.constant 0 : index
    %c0_6 = arith.constant 0 : index
    %6 = vector.load %arg4[%c0_5, %c0_6] : memref<1x8xf32, #tpu.memory_space<vmem>>, vector<1x8xf32>
    %7 = vector.broadcast %6 : vector<1x8xf32> to vector<256x8xf32>
    %8 = arith.addf %5, %7 : vector<256x8xf32>
    %cst_7 = arith.constant 0.000000e+00 : f32
    %9 = vector.broadcast %cst_7 : f32 to vector<256x8xf32>
    %10 = arith.maximumf %8, %9 : vector<256x8xf32>
    %c0_8 = arith.constant 0 : index
    %c0_9 = arith.constant 0 : index
    %11 = vector.load %arg5[%c0_8, %c0_9] : memref<256x8xf32, #tpu.memory_space<vmem>>, vector<256x8xf32>
    tpu.vector_store %arg5[%c0_8, %c0_9], %10 {strides = array<i32>} : memref<256x8xf32, #tpu.memory_space<vmem>>, vector<256x8xf32>,
    return
  }
  func.func @transform_0(%arg0: i32) -> (i32, i32) {
    %c0_i32 = arith.constant 0 : i32
    %c0_i32_0 = arith.constant 0 : i32
    return %arg0, %c0_i32 : i32, i32
  }
  func.func @transform_1(%arg0: i32) -> (i32, i32) {
    %c0_i32 = arith.constant 0 : i32
    %c0_i32_0 = arith.constant 0 : i32
    %c0_i32_1 = arith.constant 0 : i32
    return %c0_i32, %c0_i32_0 : i32, i32
  }
  func.func @transform_2(%arg0: i32) -> (i32, i32) {
    %c0_i32 = arith.constant 0 : i32
    %c0_i32_0 = arith.constant 0 : i32
    %c0_i32_1 = arith.constant 0 : i32
    return %c0_i32, %c0_i32_0 : i32, i32
  }
  func.func @transform_3(%arg0: i32) -> (i32, i32) {
    %c0_i32 = arith.constant 0 : i32
    %c0_i32_0 = arith.constant 0 : i32
    %c0_i32_1 = arith.constant 0 : i32
    return %c0_i32, %c0_i32_0 : i32, i32
  }
  func.func @transform_4(%arg0: i32) -> (i32, i32) {
    %c0_i32 = arith.constant 0 : i32
    %c0_i32_0 = arith.constant 0 : i32
    return %arg0, %c0_i32 : i32, i32
  }
}

module attributes {stable_mosaic.version = 11 : i64} {
  func.func @_maxpool_kernel(%arg0: i32, %arg1: memref<128x8xf32, #tpu.memory_space<vmem>>, %arg2: memref<128x8xf32, #tpu.memory_space<vmem>>, %arg3: memref<128x8xf32, #tpu.memory_space<vmem>>, %arg4: memref<128x8xf32, #tpu.memory_space<vmem>>, %arg5: memref<128x8xf32, #tpu.memory_space<vmem>>) attributes {dimension_semantics = [#tpu.dimension_semantics<parallel>], iteration_bounds = array<i64: 1>, scalar_prefetch = 0 : i64, scratch_operands = 0 : i64, tpu.core_type = #tpu.core_type<tc>, window_params = [{transform_indices = @transform_0, window_bounds = array<i64: 128, 8>}, {transform_indices = @transform_1, window_bounds = array<i64: 128, 8>}, {transform_indices = @transform_2, window_bounds = array<i64: 128, 8>}, {transform_indices = @transform_3, window_bounds = array<i64: 128, 8>}, {transform_indices = @transform_4, window_bounds = array<i64: 128, 8>}]} {
    %c0 = arith.constant 0 : index
    %c0_0 = arith.constant 0 : index
    %0 = vector.load %arg1[%c0, %c0_0] : memref<128x8xf32, #tpu.memory_space<vmem>>, vector<128x8xf32>
    %c0_1 = arith.constant 0 : index
    %c0_2 = arith.constant 0 : index
    %1 = vector.load %arg2[%c0_1, %c0_2] : memref<128x8xf32, #tpu.memory_space<vmem>>, vector<128x8xf32>
    %2 = arith.maximumf %0, %1 : vector<128x8xf32>
    %c0_3 = arith.constant 0 : index
    %c0_4 = arith.constant 0 : index
    %3 = vector.load %arg3[%c0_3, %c0_4] : memref<128x8xf32, #tpu.memory_space<vmem>>, vector<128x8xf32>
    %c0_5 = arith.constant 0 : index
    %c0_6 = arith.constant 0 : index
    %4 = vector.load %arg4[%c0_5, %c0_6] : memref<128x8xf32, #tpu.memory_space<vmem>>, vector<128x8xf32>
    %5 = arith.maximumf %3, %4 : vector<128x8xf32>
    %6 = arith.maximumf %2, %5 : vector<128x8xf32>
    %c0_7 = arith.constant 0 : index
    %c0_8 = arith.constant 0 : index
    %7 = vector.load %arg5[%c0_7, %c0_8] : memref<128x8xf32, #tpu.memory_space<vmem>>, vector<128x8xf32>
    tpu.vector_store %arg5[%c0_7, %c0_8], %6 {strides = array<i32>} : memref<128x8xf32, #tpu.memory_space<vmem>>, vector<128x8xf32>,
    return
  }
  func.func @transform_0(%arg0: i32) -> (i32, i32) {
    %c0_i32 = arith.constant 0 : i32
    %c0_i32_0 = arith.constant 0 : i32
    return %arg0, %c0_i32 : i32, i32
  }
  func.func @transform_1(%arg0: i32) -> (i32, i32) {
    %c0_i32 = arith.constant 0 : i32
    %c0_i32_0 = arith.constant 0 : i32
    return %arg0, %c0_i32 : i32, i32
  }
  func.func @transform_2(%arg0: i32) -> (i32, i32) {
    %c0_i32 = arith.constant 0 : i32
    %c0_i32_0 = arith.constant 0 : i32
    return %arg0, %c0_i32 : i32, i32
  }
  func.func @transform_3(%arg0: i32) -> (i32, i32) {
    %c0_i32 = arith.constant 0 : i32
    %c0_i32_0 = arith.constant 0 : i32
    return %arg0, %c0_i32 : i32, i32
  }
  func.func @transform_4(%arg0: i32) -> (i32, i32) {
    %c0_i32 = arith.constant 0 : i32
    %c0_i32_0 = arith.constant 0 : i32
    return %arg0, %c0_i32 : i32, i32
  }
}

module attributes {stable_mosaic.version = 11 : i64} {
  func.func @_conv_bn_kernel(%arg0: i32, %arg1: memref<128x36xbf16, #tpu.memory_space<vmem>>, %arg2: memref<36x8xbf16, #tpu.memory_space<vmem>>, %arg3: memref<1x8xf32, #tpu.memory_space<vmem>>, %arg4: memref<1x8xf32, #tpu.memory_space<vmem>>, %arg5: memref<128x8xf32, #tpu.memory_space<vmem>>) attributes {dimension_semantics = [#tpu.dimension_semantics<parallel>], iteration_bounds = array<i64: 1>, scalar_prefetch = 0 : i64, scratch_operands = 0 : i64, tpu.core_type = #tpu.core_type<tc>, window_params = [{transform_indices = @transform_0, window_bounds = array<i64: 128, 36>}, {pipeline_mode = #tpu.pipeline_mode<synchronous>, transform_indices = @transform_1, window_bounds = array<i64: 36, 8>}, {pipeline_mode = #tpu.pipeline_mode<synchronous>, transform_indices = @transform_2, window_bounds = array<i64: 1, 8>}, {pipeline_mode = #tpu.pipeline_mode<synchronous>, transform_indices = @transform_3, window_bounds = array<i64: 1, 8>}, {transform_indices = @transform_4, window_bounds = array<i64: 128, 8>}]} {
    %c0 = arith.constant 0 : index
    %c0_0 = arith.constant 0 : index
    %0 = vector.load %arg1[%c0, %c0_0] : memref<128x36xbf16, #tpu.memory_space<vmem>>, vector<128x36xbf16>
    %c0_1 = arith.constant 0 : index
    %c0_2 = arith.constant 0 : index
    %1 = vector.load %arg2[%c0_1, %c0_2] : memref<36x8xbf16, #tpu.memory_space<vmem>>, vector<36x8xbf16>
    %cst = arith.constant dense<0.000000e+00> : vector<128x8xf32>
    %2 = tpu.matmul %0, %1, %cst {dimension_numbers = #tpu.dot_dimension_numbers<[1], [0], [0], [1], [0, 0, 1, 1], [], []>} : vector<128x36xbf16>, vector<36x8xbf16>, vector<128x8xf32> -> vector<128x8xf32>
    %c0_3 = arith.constant 0 : index
    %c0_4 = arith.constant 0 : index
    %3 = vector.load %arg3[%c0_3, %c0_4] : memref<1x8xf32, #tpu.memory_space<vmem>>, vector<1x8xf32>
    %4 = vector.broadcast %3 : vector<1x8xf32> to vector<128x8xf32>
    %5 = arith.mulf %2, %4 : vector<128x8xf32>
    %c0_5 = arith.constant 0 : index
    %c0_6 = arith.constant 0 : index
    %6 = vector.load %arg4[%c0_5, %c0_6] : memref<1x8xf32, #tpu.memory_space<vmem>>, vector<1x8xf32>
    %7 = vector.broadcast %6 : vector<1x8xf32> to vector<128x8xf32>
    %8 = arith.addf %5, %7 : vector<128x8xf32>
    %cst_7 = arith.constant 0.000000e+00 : f32
    %9 = vector.broadcast %cst_7 : f32 to vector<128x8xf32>
    %10 = arith.maximumf %8, %9 : vector<128x8xf32>
    %c0_8 = arith.constant 0 : index
    %c0_9 = arith.constant 0 : index
    %11 = vector.load %arg5[%c0_8, %c0_9] : memref<128x8xf32, #tpu.memory_space<vmem>>, vector<128x8xf32>
    tpu.vector_store %arg5[%c0_8, %c0_9], %10 {strides = array<i32>} : memref<128x8xf32, #tpu.memory_space<vmem>>, vector<128x8xf32>,
    return
  }
  func.func @transform_0(%arg0: i32) -> (i32, i32) {
    %c0_i32 = arith.constant 0 : i32
    %c0_i32_0 = arith.constant 0 : i32
    return %arg0, %c0_i32 : i32, i32
  }
  func.func @transform_1(%arg0: i32) -> (i32, i32) {
    %c0_i32 = arith.constant 0 : i32
    %c0_i32_0 = arith.constant 0 : i32
    %c0_i32_1 = arith.constant 0 : i32
    return %c0_i32, %c0_i32_0 : i32, i32
  }
  func.func @transform_2(%arg0: i32) -> (i32, i32) {
    %c0_i32 = arith.constant 0 : i32
    %c0_i32_0 = arith.constant 0 : i32
    %c0_i32_1 = arith.constant 0 : i32
    return %c0_i32, %c0_i32_0 : i32, i32
  }
  func.func @transform_3(%arg0: i32) -> (i32, i32) {
    %c0_i32 = arith.constant 0 : i32
    %c0_i32_0 = arith.constant 0 : i32
    %c0_i32_1 = arith.constant 0 : i32
    return %c0_i32, %c0_i32_0 : i32, i32
  }
  func.func @transform_4(%arg0: i32) -> (i32, i32) {
    %c0_i32 = arith.constant 0 : i32
    %c0_i32_0 = arith.constant 0 : i32
    return %arg0, %c0_i32 : i32, i32
  }
}

module attributes {stable_mosaic.version = 11 : i64} {
  func.func @_conv_bn_kernel(%arg0: i32, %arg1: memref<128x72xbf16, #tpu.memory_space<vmem>>, %arg2: memref<72x8xbf16, #tpu.memory_space<vmem>>, %arg3: memref<1x8xf32, #tpu.memory_space<vmem>>, %arg4: memref<1x8xf32, #tpu.memory_space<vmem>>, %arg5: memref<128x8xf32, #tpu.memory_space<vmem>>, %arg6: memref<128x8xf32, #tpu.memory_space<vmem>>) attributes {dimension_semantics = [#tpu.dimension_semantics<parallel>], iteration_bounds = array<i64: 1>, scalar_prefetch = 0 : i64, scratch_operands = 0 : i64, tpu.core_type = #tpu.core_type<tc>, window_params = [{transform_indices = @transform_0, window_bounds = array<i64: 128, 72>}, {pipeline_mode = #tpu.pipeline_mode<synchronous>, transform_indices = @transform_1, window_bounds = array<i64: 72, 8>}, {pipeline_mode = #tpu.pipeline_mode<synchronous>, transform_indices = @transform_2, window_bounds = array<i64: 1, 8>}, {pipeline_mode = #tpu.pipeline_mode<synchronous>, transform_indices = @transform_3, window_bounds = array<i64: 1, 8>}, {transform_indices = @transform_4, window_bounds = array<i64: 128, 8>}, {transform_indices = @transform_5, window_bounds = array<i64: 128, 8>}]} {
    %c0 = arith.constant 0 : index
    %c0_0 = arith.constant 0 : index
    %0 = vector.load %arg1[%c0, %c0_0] : memref<128x72xbf16, #tpu.memory_space<vmem>>, vector<128x72xbf16>
    %c0_1 = arith.constant 0 : index
    %c0_2 = arith.constant 0 : index
    %1 = vector.load %arg2[%c0_1, %c0_2] : memref<72x8xbf16, #tpu.memory_space<vmem>>, vector<72x8xbf16>
    %cst = arith.constant dense<0.000000e+00> : vector<128x8xf32>
    %2 = tpu.matmul %0, %1, %cst {dimension_numbers = #tpu.dot_dimension_numbers<[1], [0], [0], [1], [0, 0, 1, 1], [], []>} : vector<128x72xbf16>, vector<72x8xbf16>, vector<128x8xf32> -> vector<128x8xf32>
    %c0_3 = arith.constant 0 : index
    %c0_4 = arith.constant 0 : index
    %3 = vector.load %arg3[%c0_3, %c0_4] : memref<1x8xf32, #tpu.memory_space<vmem>>, vector<1x8xf32>
    %4 = vector.broadcast %3 : vector<1x8xf32> to vector<128x8xf32>
    %5 = arith.mulf %2, %4 : vector<128x8xf32>
    %c0_5 = arith.constant 0 : index
    %c0_6 = arith.constant 0 : index
    %6 = vector.load %arg4[%c0_5, %c0_6] : memref<1x8xf32, #tpu.memory_space<vmem>>, vector<1x8xf32>
    %7 = vector.broadcast %6 : vector<1x8xf32> to vector<128x8xf32>
    %8 = arith.addf %5, %7 : vector<128x8xf32>
    %c0_7 = arith.constant 0 : index
    %c0_8 = arith.constant 0 : index
    %9 = vector.load %arg5[%c0_7, %c0_8] : memref<128x8xf32, #tpu.memory_space<vmem>>, vector<128x8xf32>
    %10 = arith.addf %8, %9 : vector<128x8xf32>
    %cst_9 = arith.constant 0.000000e+00 : f32
    %11 = vector.broadcast %cst_9 : f32 to vector<128x8xf32>
    %12 = arith.maximumf %10, %11 : vector<128x8xf32>
    %c0_10 = arith.constant 0 : index
    %c0_11 = arith.constant 0 : index
    %13 = vector.load %arg6[%c0_10, %c0_11] : memref<128x8xf32, #tpu.memory_space<vmem>>, vector<128x8xf32>
    tpu.vector_store %arg6[%c0_10, %c0_11], %12 {strides = array<i32>} : memref<128x8xf32, #tpu.memory_space<vmem>>, vector<128x8xf32>,
    return
  }
  func.func @transform_0(%arg0: i32) -> (i32, i32) {
    %c0_i32 = arith.constant 0 : i32
    %c0_i32_0 = arith.constant 0 : i32
    return %arg0, %c0_i32 : i32, i32
  }
  func.func @transform_1(%arg0: i32) -> (i32, i32) {
    %c0_i32 = arith.constant 0 : i32
    %c0_i32_0 = arith.constant 0 : i32
    %c0_i32_1 = arith.constant 0 : i32
    return %c0_i32, %c0_i32_0 : i32, i32
  }
  func.func @transform_2(%arg0: i32) -> (i32, i32) {
    %c0_i32 = arith.constant 0 : i32
    %c0_i32_0 = arith.constant 0 : i32
    %c0_i32_1 = arith.constant 0 : i32
    return %c0_i32, %c0_i32_0 : i32, i32
  }
  func.func @transform_3(%arg0: i32) -> (i32, i32) {
    %c0_i32 = arith.constant 0 : i32
    %c0_i32_0 = arith.constant 0 : i32
    %c0_i32_1 = arith.constant 0 : i32
    return %c0_i32, %c0_i32_0 : i32, i32
  }
  func.func @transform_4(%arg0: i32) -> (i32, i32) {
    %c0_i32 = arith.constant 0 : i32
    %c0_i32_0 = arith.constant 0 : i32
    return %arg0, %c0_i32 : i32, i32
  }
  func.func @transform_5(%arg0: i32) -> (i32, i32) {
    %c0_i32 = arith.constant 0 : i32
    %c0_i32_0 = arith.constant 0 : i32
    return %arg0, %c0_i32 : i32, i32
  }
}

</mosaic_0001>

<llo_original>
// kernel: resnet2_forward.6
$region0: #{resnet2_forward.6}
  #allocation0 [shape = 'u32[]', space=smem, size = 0x4, offset = 0x4, fixed_abs, tag = 'smem constant byte address 0x4 - core index']
  #allocation1 [shape = 'u32[144,128]{1,0:T(1,128)}', space=vmem, size = 0x12000, scoped, tag = 'internal scratch']
  %s0 = inlined_call_operand.vmem [shape: f32[128,8], index: 0, kind: input, shape index: {}]
  %s1 = inlined_call_operand.vmem [shape: f32[128,8], index: 1, kind: input, shape index: {}]
  %s2 = inlined_call_operand.vmem [shape: f32[128,8], index: 2, kind: input, shape index: {}]
  %s3 = inlined_call_operand.vmem [shape: f32[128,8], index: 3, kind: input, shape index: {}]
  %s4 = inlined_call_operand.vmem [shape: f32[128,8], index: 4, kind: output, shape index: {}]
  %s5 = sld [smem:[#allocation0]]
  $region26: #{resnet2_forward.6} parent=0
    _
  %s7 = ssub.s32 1, %s5
  %s8 = scalar_select 0, %s7, %s5
  // Predicated region
  $region2: #{resnet2_forward.6} parent=0 // pred_check
    _
  $region3: #{resnet2_forward.6} parent=0 // pred_check_branch
    %10 = sbr.rel (0) target = $region5
  $region4: #{resnet2_forward.6} parent=0 // pred_region
    _
  $region5: #{resnet2_forward.6} parent=0 // pred_fallthru
    _
  // Predicated region
  $region6: #{resnet2_forward.6} parent=0 // pred_check
    _
  $region7: #{resnet2_forward.6} parent=0 // pred_check_branch
    %12 = sbr.rel (0) target = $region9
  $region8: #{resnet2_forward.6} parent=0 // pred_region
    _
  $region9: #{resnet2_forward.6} parent=0 // pred_fallthru
    _
  // Predicated region
  $region10: #{resnet2_forward.6} parent=0 // pred_check
    _
  $region11: #{resnet2_forward.6} parent=0 // pred_check_branch
    %14 = sbr.rel (0) target = $region13
  $region12: #{resnet2_forward.6} parent=0 // pred_region
    _
  $region13: #{resnet2_forward.6} parent=0 // pred_fallthru
    _
  // Predicated region
  $region14: #{resnet2_forward.6} parent=0 // pred_check
    _
  $region15: #{resnet2_forward.6} parent=0 // pred_check_branch
    %16 = sbr.rel (0) target = $region17
  $region16: #{resnet2_forward.6} parent=0 // pred_region
    _
  $region17: #{resnet2_forward.6} parent=0 // pred_fallthru
    _
  %v17 = vld [vmem:[%s0] sm:$0xff]
  %v18 = vld [vmem:[%s0 + $0x8] sm:$0xff]
  %v19 = vld [vmem:[%s0 + $0x10] sm:$0xff]
  %v20 = vld [vmem:[%s0 + $0x18] sm:$0xff]
  %v21 = vld [vmem:[%s0 + $0x20] sm:$0xff]
  %v22 = vld [vmem:[%s0 + $0x28] sm:$0xff]
  %v23 = vld [vmem:[%s0 + $0x30] sm:$0xff]
  %v24 = vld [vmem:[%s0 + $0x38] sm:$0xff]
  %v25 = vld [vmem:[%s0 + $0x40] sm:$0xff]
  %v26 = vld [vmem:[%s0 + $0x48] sm:$0xff]
  %v27 = vld [vmem:[%s0 + $0x50] sm:$0xff]
  %v28 = vld [vmem:[%s0 + $0x58] sm:$0xff]
  %v29 = vld [vmem:[%s0 + $0x60] sm:$0xff]
  %v30 = vld [vmem:[%s0 + $0x68] sm:$0xff]
  %v31 = vld [vmem:[%s0 + $0x70] sm:$0xff]
  %v32 = vld [vmem:[%s0 + $0x78] sm:$0xff]
  %v33 = vld [vmem:[%s1] sm:$0xff]
  %v34 = vld [vmem:[%s1 + $0x8] sm:$0xff]
  %v35 = vld [vmem:[%s1 + $0x10] sm:$0xff]
  %v36 = vld [vmem:[%s1 + $0x18] sm:$0xff]
  %v37 = vld [vmem:[%s1 + $0x20] sm:$0xff]
  %v38 = vld [vmem:[%s1 + $0x28] sm:$0xff]
  %v39 = vld [vmem:[%s1 + $0x30] sm:$0xff]
  %v40 = vld [vmem:[%s1 + $0x38] sm:$0xff]
  %v41 = vld [vmem:[%s1 + $0x40] sm:$0xff]
  %v42 = vld [vmem:[%s1 + $0x48] sm:$0xff]
  %v43 = vld [vmem:[%s1 + $0x50] sm:$0xff]
  %v44 = vld [vmem:[%s1 + $0x58] sm:$0xff]
  %v45 = vld [vmem:[%s1 + $0x60] sm:$0xff]
  %v46 = vld [vmem:[%s1 + $0x68] sm:$0xff]
  %v47 = vld [vmem:[%s1 + $0x70] sm:$0xff]
  %v48 = vld [vmem:[%s1 + $0x78] sm:$0xff]
  %v49 = vmax.f32 %v17, %v33
  %v50 = vmax.f32 %v18, %v34
  %v51 = vmax.f32 %v19, %v35
  %v52 = vmax.f32 %v20, %v36
  %v53 = vmax.f32 %v21, %v37
  %v54 = vmax.f32 %v22, %v38
  %v55 = vmax.f32 %v23, %v39
  %v56 = vmax.f32 %v24, %v40
  %v57 = vmax.f32 %v25, %v41
  %v58 = vmax.f32 %v26, %v42
  %v59 = vmax.f32 %v27, %v43
  %v60 = vmax.f32 %v28, %v44
  %v61 = vmax.f32 %v29, %v45
  %v62 = vmax.f32 %v30, %v46
  %v63 = vmax.f32 %v31, %v47
  %v64 = vmax.f32 %v32, %v48
  %v65 = vld [vmem:[%s2] sm:$0xff]
  %v66 = vld [vmem:[%s2 + $0x8] sm:$0xff]
  %v67 = vld [vmem:[%s2 + $0x10] sm:$0xff]
  %v68 = vld [vmem:[%s2 + $0x18] sm:$0xff]
  %v69 = vld [vmem:[%s2 + $0x20] sm:$0xff]
  %v70 = vld [vmem:[%s2 + $0x28] sm:$0xff]
  %v71 = vld [vmem:[%s2 + $0x30] sm:$0xff]
  %v72 = vld [vmem:[%s2 + $0x38] sm:$0xff]
  %v73 = vld [vmem:[%s2 + $0x40] sm:$0xff]
  %v74 = vld [vmem:[%s2 + $0x48] sm:$0xff]
  %v75 = vld [vmem:[%s2 + $0x50] sm:$0xff]
  %v76 = vld [vmem:[%s2 + $0x58] sm:$0xff]
  %v77 = vld [vmem:[%s2 + $0x60] sm:$0xff]
  %v78 = vld [vmem:[%s2 + $0x68] sm:$0xff]
  %v79 = vld [vmem:[%s2 + $0x70] sm:$0xff]
  %v80 = vld [vmem:[%s2 + $0x78] sm:$0xff]
  %v81 = vld [vmem:[%s3] sm:$0xff]
  %v82 = vld [vmem:[%s3 + $0x8] sm:$0xff]
  %v83 = vld [vmem:[%s3 + $0x10] sm:$0xff]
  %v84 = vld [vmem:[%s3 + $0x18] sm:$0xff]
  %v85 = vld [vmem:[%s3 + $0x20] sm:$0xff]
  %v86 = vld [vmem:[%s3 + $0x28] sm:$0xff]
  %v87 = vld [vmem:[%s3 + $0x30] sm:$0xff]
  %v88 = vld [vmem:[%s3 + $0x38] sm:$0xff]
  %v89 = vld [vmem:[%s3 + $0x40] sm:$0xff]
  %v90 = vld [vmem:[%s3 + $0x48] sm:$0xff]
  %v91 = vld [vmem:[%s3 + $0x50] sm:$0xff]
  %v92 = vld [vmem:[%s3 + $0x58] sm:$0xff]
  %v93 = vld [vmem:[%s3 + $0x60] sm:$0xff]
  %v94 = vld [vmem:[%s3 + $0x68] sm:$0xff]
  %v95 = vld [vmem:[%s3 + $0x70] sm:$0xff]
  %v96 = vld [vmem:[%s3 + $0x78] sm:$0xff]
  %v97 = vmax.f32 %v65, %v81
  %v98 = vmax.f32 %v66, %v82
  %v99 = vmax.f32 %v67, %v83
  %v100 = vmax.f32 %v68, %v84
  %v101 = vmax.f32 %v69, %v85
  %v102 = vmax.f32 %v70, %v86
  %v103 = vmax.f32 %v71, %v87
  %v104 = vmax.f32 %v72, %v88
  %v105 = vmax.f32 %v73, %v89
  %v106 = vmax.f32 %v74, %v90
  %v107 = vmax.f32 %v75, %v91
  %v108 = vmax.f32 %v76, %v92
  %v109 = vmax.f32 %v77, %v93
  %v110 = vmax.f32 %v78, %v94
  %v111 = vmax.f32 %v79, %v95
  %v112 = vmax.f32 %v80, %v96
  %v113 = vmax.f32 %v49, %v97
  %v114 = vmax.f32 %v50, %v98
  %v115 = vmax.f32 %v51, %v99
  %v116 = vmax.f32 %v52, %v100
  %v117 = vmax.f32 %v53, %v101
  %v118 = vmax.f32 %v54, %v102
  %v119 = vmax.f32 %v55, %v103
  %v120 = vmax.f32 %v56, %v104
  %v121 = vmax.f32 %v57, %v105
  %v122 = vmax.f32 %v58, %v106
  %v123 = vmax.f32 %v59, %v107
  %v124 = vmax.f32 %v60, %v108
  %v125 = vmax.f32 %v61, %v109
  %v126 = vmax.f32 %v62, %v110
  %v127 = vmax.f32 %v63, %v111
  %v128 = vmax.f32 %v64, %v112
  %vm129 = vcmask 64512
  %130 = vst.msk [vmem:[%s4] sm:$0xff] %vm129, %v113
  %131 = vst.msk [vmem:[%s4 + $0x8] sm:$0xff] %vm129, %v114
  %132 = vst.msk [vmem:[%s4 + $0x10] sm:$0xff] %vm129, %v115
  %133 = vst.msk [vmem:[%s4 + $0x18] sm:$0xff] %vm129, %v116
  %134 = vst.msk [vmem:[%s4 + $0x20] sm:$0xff] %vm129, %v117
  %135 = vst.msk [vmem:[%s4 + $0x28] sm:$0xff] %vm129, %v118
  %136 = vst.msk [vmem:[%s4 + $0x30] sm:$0xff] %vm129, %v119
  %137 = vst.msk [vmem:[%s4 + $0x38] sm:$0xff] %vm129, %v120
  %138 = vst.msk [vmem:[%s4 + $0x40] sm:$0xff] %vm129, %v121
  %139 = vst.msk [vmem:[%s4 + $0x48] sm:$0xff] %vm129, %v122
  %140 = vst.msk [vmem:[%s4 + $0x50] sm:$0xff] %vm129, %v123
  %141 = vst.msk [vmem:[%s4 + $0x58] sm:$0xff] %vm129, %v124
  %142 = vst.msk [vmem:[%s4 + $0x60] sm:$0xff] %vm129, %v125
  %143 = vst.msk [vmem:[%s4 + $0x68] sm:$0xff] %vm129, %v126
  %144 = vst.msk [vmem:[%s4 + $0x70] sm:$0xff] %vm129, %v127
  %145 = vst.msk [vmem:[%s4 + $0x78] sm:$0xff] %vm129, %v128
  // Predicated region
  $region18: #{resnet2_forward.6} parent=0 // pred_check
    _
  $region19: #{resnet2_forward.6} parent=0 // pred_check_branch
    %147 = sbr.rel (0) target = $region21
  $region20: #{resnet2_forward.6} parent=0 // pred_region
    _
  $region21: #{resnet2_forward.6} parent=0 // pred_fallthru
    _
  // Predicated region
  $region22: #{resnet2_forward.6} parent=0 // pred_check
    _
  $region23: #{resnet2_forward.6} parent=0 // pred_check_branch
    %149 = sbr.rel (0) target = $region25
  $region24: #{resnet2_forward.6} parent=0 // pred_region
    _
  $region25: #{resnet2_forward.6} parent=0 // pred_fallthru
    _

// kernel: resnet2_forward.5
$region0: #{resnet2_forward.5}
  #allocation0 [shape = 'u32[]', space=smem, size = 0x4, offset = 0x4, fixed_abs, tag = 'smem constant byte address 0x4 - core index']
  #allocation1 [shape = 'u32[144,128]{1,0:T(1,128)}', space=vmem, size = 0x12000, scoped, tag = 'internal scratch']
  %s0 = inlined_call_operand.vmem [shape: bf16[512,36], index: 0, kind: input, shape index: {}]
  %s1 = inlined_call_operand.vmem [shape: bf16[36,8], index: 1, kind: input, shape index: {}]
  %s2 = inlined_call_operand.vmem [shape: f32[1,8], index: 2, kind: input, shape index: {}]
  %s3 = inlined_call_operand.vmem [shape: f32[1,8], index: 3, kind: input, shape index: {}]
  %s4 = inlined_call_operand.vmem [shape: f32[512,8], index: 4, kind: output, shape index: {}]
  %s5 = sld [smem:[#allocation0]]
  $region49: #{resnet2_forward.5} parent=0
    _
  %s7 = ssub.s32 1, %s5
  %s8 = scalar_select 0, %s7, %s5
  loop: start=0, step=1, limit=4
  $region2: #{resnet2_forward.5} parent=0 // loop_pre_header
    _
  $region3: #{resnet2_forward.5} parent=0 // loop_header
    %s10 = sphi 0, %s14
    %p11 = scmp.ge.s32.totalorder %s10, 4
    %s20 = sphi 0, %s22
    %s23 = sphi 0, %s20
    %s24 = sphi 0, %s23
    %s40 = sphi 0, %s24
    %s44 = sphi 0, %s44
    %s46 = sphi 0, %s44
    %s47 = sphi 0, %s46
    %s61 = sphi 0, %s47
    %s65 = sphi 0, %s65
    %s67 = sphi 0, %s65
    %s68 = sphi 0, %s67
    %s82 = sphi 0, %s68
    %s86 = sphi 0, %s86
    %s88 = sphi 0, %s86
    %s89 = sphi 0, %s88
    %s103 = sphi 0, %s89
    %s109 = sphi 0, %s111
    %s112 = sphi 0, %s109
    %s113 = sphi 0, %s112
    %s129 = sphi 0, %s113
  $region4: #{resnet2_forward.5} parent=0 // loop_header_branch
    %13 = sbr.rel (%p11) target = $region8
  $region5: #{resnet2_forward.5} parent=0 // loop_body
    %s15 = ssub.s32 %s10, 1
    %s16 = ssub.s32 %s10, 2
    %s17 = sadd.s32 %s10, 1
    %s18 = ssub.s32 %s10, %s17
    %p19 = scmp.eq.s32.totalorder %s18, 0
    %s21 = sadd.s32 %s20, 1
    %s22 = scalar_select %p19, %s20, %s21
    %p25 = pneg %p19
    %p26 = scmp.eq.s32.totalorder %s10, 1
    %p27 = por %p25, %p26
    %p28 = scmp.ne.s32.totalorder %s20, %s23
    %p29 = scmp.eq.s32.totalorder %s10, 0
    %p30 = por %p28, %p29
    %p31 = scmp.ne.s32.totalorder %s20, %s23
    %p32 = scmp.eq.s32.totalorder %s15, 1
    %p33 = por %p31, %p32
    %p34 = scmp.ne.s32.totalorder %s23, %s24
    %p35 = scmp.eq.s32.totalorder %s15, 0
    %p36 = por %p34, %p35
    %p37 = scmp.ne.s32.totalorder %s23, %s24
    %p38 = scmp.eq.s32.totalorder %s16, 1
    %p39 = por %p37, %p38
    %p41 = scmp.ne.s32.totalorder %s24, %s40
    %p42 = scmp.eq.s32.totalorder %s16, 0
    %p43 = por %p41, %p42
    %s45 = sadd.s32 %s44, 1
    %p48 = scmp.eq.s32.totalorder %s10, 1
    %p49 = scmp.ne.s32.totalorder %s44, %s46
    %p50 = scmp.eq.s32.totalorder %s10, 0
    %p51 = por %p49, %p50
    %p52 = scmp.ne.s32.totalorder %s44, %s46
    %p53 = scmp.eq.s32.totalorder %s15, 1
    %p54 = por %p52, %p53
    %p55 = scmp.ne.s32.totalorder %s46, %s47
    %p56 = scmp.eq.s32.totalorder %s15, 0
    %p57 = por %p55, %p56
    %p58 = scmp.ne.s32.totalorder %s46, %s47
    %p59 = scmp.eq.s32.totalorder %s16, 1
    %p60 = por %p58, %p59
    %p62 = scmp.ne.s32.totalorder %s47, %s61
    %p63 = scmp.eq.s32.totalorder %s16, 0
    %p64 = por %p62, %p63
    %s66 = sadd.s32 %s65, 1
    %p69 = scmp.eq.s32.totalorder %s10, 1
    %p70 = scmp.ne.s32.totalorder %s65, %s67
    %p71 = scmp.eq.s32.totalorder %s10, 0
    %p72 = por %p70, %p71
    %p73 = scmp.ne.s32.totalorder %s65, %s67
    %p74 = scmp.eq.s32.totalorder %s15, 1
    %p75 = por %p73, %p74
    %p76 = scmp.ne.s32.totalorder %s67, %s68
    %p77 = scmp.eq.s32.totalorder %s15, 0
    %p78 = por %p76, %p77
    %p79 = scmp.ne.s32.totalorder %s67, %s68
    %p80 = scmp.eq.s32.totalorder %s16, 1
    %p81 = por %p79, %p80
    %p83 = scmp.ne.s32.totalorder %s68, %s82
    %p84 = scmp.eq.s32.totalorder %s16, 0
    %p85 = por %p83, %p84
    %s87 = sadd.s32 %s86, 1
    %p90 = scmp.eq.s32.totalorder %s10, 1
    %p91 = scmp.ne.s32.totalorder %s86, %s88
    %p92 = scmp.eq.s32.totalorder %s10, 0
    %p93 = por %p91, %p92
    %p94 = scmp.ne.s32.totalorder %s86, %s88
    %p95 = scmp.eq.s32.totalorder %s15, 1
    %p96 = por %p94, %p95
    %p97 = scmp.ne.s32.totalorder %s88, %s89
    %p98 = scmp.eq.s32.totalorder %s15, 0
    %p99 = por %p97, %p98
    %p100 = scmp.ne.s32.totalorder %s88, %s89
    %p101 = scmp.eq.s32.totalorder %s16, 1
    %p102 = por %p100, %p101
    %p104 = scmp.ne.s32.totalorder %s89, %s103
    %p105 = scmp.eq.s32.totalorder %s16, 0
    %p106 = por %p104, %p105
    %s107 = ssub.s32 %s10, %s17
    %p108 = scmp.eq.s32.totalorder %s107, 0
    %s110 = sadd.s32 %s109, 1
    %s111 = scalar_select %p108, %s109, %s110
    %p114 = pneg %p108
    %p115 = scmp.eq.s32.totalorder %s10, 1
    %p116 = por %p114, %p115
    %p117 = scmp.ne.s32.totalorder %s109, %s112
    %p118 = scmp.eq.s32.totalorder %s10, 0
    %p119 = por %p117, %p118
    %p120 = scmp.ne.s32.totalorder %s109, %s112
    %p121 = scmp.eq.s32.totalorder %s15, 1
    %p122 = por %p120, %p121
    %p123 = scmp.ne.s32.totalorder %s112, %s113
    %p124 = scmp.eq.s32.totalorder %s15, 0
    %p125 = por %p123, %p124
    %p126 = scmp.ne.s32.totalorder %s112, %s113
    %p127 = scmp.eq.s32.totalorder %s16, 1
    %p128 = por %p126, %p127
    %p130 = scmp.ne.s32.totalorder %s113, %s129
    %p131 = scmp.eq.s32.totalorder %s16, 0
    %p132 = por %p130, %p131
    %p133 = scmp.le.s32.totalorder 1, %s10
    %p134 = scmp.lt.s32.totalorder %s10, 3
    %p135 = pnand %p133, %p134
    %p136 = pneg %p135
    // Predicated region
    $region9: #{resnet2_forward.5} parent=5 // pred_check
      _
    $region10: #{resnet2_forward.5} parent=5 // pred_check_branch
      %138 = sbr.rel (%p135) target = $region12
    $region11: #{resnet2_forward.5} parent=5 // pred_region
      %s139 = ssub.s32 %s10, 1
      // Predicated region
      $region13: #{resnet2_forward.5} parent=11 // pred_check
        %p140 = pneg %p57
      $region14: #{resnet2_forward.5} parent=11 // pred_check_branch
        %142 = sbr.rel (%p140) target = $region16
      $region15: #{resnet2_forward.5} parent=11 // pred_region
        _
      $region16: #{resnet2_forward.5} parent=11 // pred_fallthru
        _
      // Predicated region
      $region17: #{resnet2_forward.5} parent=11 // pred_check
        %p143 = pneg %p78
      $region18: #{resnet2_forward.5} parent=11 // pred_check_branch
        %145 = sbr.rel (%p143) target = $region20
      $region19: #{resnet2_forward.5} parent=11 // pred_region
        _
      $region20: #{resnet2_forward.5} parent=11 // pred_fallthru
        _
      // Predicated region
      $region21: #{resnet2_forward.5} parent=11 // pred_check
        %p146 = pneg %p99
      $region22: #{resnet2_forward.5} parent=11 // pred_check_branch
        %148 = sbr.rel (%p146) target = $region24
      $region23: #{resnet2_forward.5} parent=11 // pred_region
        _
      $region24: #{resnet2_forward.5} parent=11 // pred_fallthru
        _
    $region12: #{resnet2_forward.5} parent=5 // pred_fallthru
      _
    %p149 = scmp.lt.s32.totalorder %s10, 2
    // Predicated region
    $region25: #{resnet2_forward.5} parent=5 // pred_check
      %p150 = pneg %p149
    $region26: #{resnet2_forward.5} parent=5 // pred_check_branch
      %152 = sbr.rel (%p150) target = $region28
    $region27: #{resnet2_forward.5} parent=5 // pred_region
      // Predicated region
      $region29: #{resnet2_forward.5} parent=27 // pred_check
        %p153 = pneg %p30
      $region30: #{resnet2_forward.5} parent=27 // pred_check_branch
        %155 = sbr.rel (%p153) target = $region32
      $region31: #{resnet2_forward.5} parent=27 // pred_region
        %s156 = smul.u32 32, %s10
        %p157 = scmp.lt.s32.totalorder %s156, 63
        %s158 = scalar_select %p157, %s156, 63
        %s159 = smul.addr %s158, 4
        %s160 = scalar_lea.vmem %s0, %s159
        %s161 = smul.u32 32, %s10
      $region32: #{resnet2_forward.5} parent=27 // pred_fallthru
        _
    $region28: #{resnet2_forward.5} parent=5 // pred_fallthru
      _
    %p162 = scmp.le.s32.totalorder 1, %s10
    %p163 = scmp.lt.s32.totalorder %s10, 3
    %p164 = pnand %p162, %p163
    %p165 = pneg %p164
    // Predicated region
    $region33: #{resnet2_forward.5} parent=5 // pred_check
      _
    $region34: #{resnet2_forward.5} parent=5 // pred_check_branch
      %167 = sbr.rel (%p164) target = $region36
    $region35: #{resnet2_forward.5} parent=5 // pred_region
      %s168 = ssub.s32 %s10, 1
      %s169 = smul.u32 32, %s15
      %p170 = scmp.lt.s32.totalorder %s169, 63
      %s171 = scalar_select %p170, %s169, 63
      %s172 = smul.addr %s171, 4
      %s173 = scalar_lea.vmem %s0, %s172
      %p174 = pneg %p36
      %p175 = pneg %p33
      %p176 = pneg %p57
      %p177 = pneg %p54
      %p178 = pneg %p78
      %p179 = pneg %p75
      %p180 = pneg %p99
      %p181 = pneg %p96
      %p182 = pneg %p125
      %p183 = pneg %p122
      %s184 = smul.u32 32, %s15
      %p185 = scmp.lt.s32.totalorder %s184, 63
      %s186 = scalar_select %p185, %s184, 63
      %s187 = smul.addr %s186, 8
      %s188 = scalar_lea.vmem %s4, %s187
      %s189 = smul.u32 32, %s15
      %p190 = scmp.lt.s32.totalorder %s189, 63
      %s191 = scalar_select %p190, %s189, 63
      %s192 = smul.addr %s191, 4
      %s193 = scalar_lea.vmem %s0, %s192
      %s194 = smul.u32 32, %s15
      %s195 = smul.u32 32, %s15
      %p196 = scmp.lt.s32.totalorder %s195, 63
      %s197 = scalar_select %p196, %s195, 63
      %s198 = smul.addr %s197, 8
      %s199 = scalar_lea.vmem %s4, %s198
      %s200 = smul.u32 32, %s15
      %v202 = vld [vmem:[%s193] sm:$0xf]
      %v203 = vld [vmem:[%s193 + $0x4] sm:$0xf]
      %v204 = vld [vmem:[%s193 + $0x8] sm:$0xf]
      %v205 = vld [vmem:[%s193 + $0xc] sm:$0xf]
      %v206 = vld [vmem:[%s193 + $0x10] sm:$0xf]
      %v207 = vld [vmem:[%s193 + $0x14] sm:$0xf]
      %v208 = vld [vmem:[%s193 + $0x18] sm:$0xf]
      %v209 = vld [vmem:[%s193 + $0x1c] sm:$0xf]
      %v210 = vld [vmem:[%s193 + $0x20] sm:$0xf]
      %v211 = vld [vmem:[%s193 + $0x24] sm:$0xf]
      %v212 = vld [vmem:[%s193 + $0x28] sm:$0xf]
      %v213 = vld [vmem:[%s193 + $0x2c] sm:$0xf]
      %v214 = vld [vmem:[%s193 + $0x30] sm:$0xf]
      %v215 = vld [vmem:[%s193 + $0x34] sm:$0xf]
      %v216 = vld [vmem:[%s193 + $0x38] sm:$0xf]
      %v217 = vld [vmem:[%s193 + $0x3c] sm:$0xf]
      %v218 = vld [vmem:[%s193 + $0x40] sm:$0xf]
      %v219 = vld [vmem:[%s193 + $0x44] sm:$0xf]
      %v220 = vld [vmem:[%s193 + $0x48] sm:$0xf]
      %v221 = vld [vmem:[%s193 + $0x4c] sm:$0xf]
      %v222 = vld [vmem:[%s193 + $0x50] sm:$0xf]
      %v223 = vld [vmem:[%s193 + $0x54] sm:$0xf]
      %v224 = vld [vmem:[%s193 + $0x58] sm:$0xf]
      %v225 = vld [vmem:[%s193 + $0x5c] sm:$0xf]
      %v226 = vld [vmem:[%s193 + $0x60] sm:$0xf]
      %v227 = vld [vmem:[%s193 + $0x64] sm:$0xf]
      %v228 = vld [vmem:[%s193 + $0x68] sm:$0xf]
      %v229 = vld [vmem:[%s193 + $0x6c] sm:$0xf]
      %v230 = vld [vmem:[%s193 + $0x70] sm:$0xf]
      %v231 = vld [vmem:[%s193 + $0x74] sm:$0xf]
      %v232 = vld [vmem:[%s193 + $0x78] sm:$0xf]
      %v233 = vld [vmem:[%s193 + $0x7c] sm:$0xf]
      %v234 = vld [vmem:[%s1] sm:$0xf]
      %v235 = vld [vmem:[%s1 + $0x4] sm:$0xf]
      %v236 = vld [vmem:[%s1 + $0x8] sm:$0xf]
      %v237 = vld [vmem:[%s1 + $0xc] sm:$0xf]
      %v238 = vld [vmem:[%s1 + $0x10] sm:$0x3]
      %v271 = vunpack.c.l.b16 %v202
      %v272 = vunpack.c.l.b16 %v203
      %v273 = vunpack.c.l.b16 %v204
      %v274 = vunpack.c.l.b16 %v205
      %v275 = vunpack.c.l.b16 %v206
      %v276 = vunpack.c.l.b16 %v207
      %v277 = vunpack.c.l.b16 %v208
      %v278 = vunpack.c.l.b16 %v209
      %v279 = vunpack.c.l.b16 %v210
      %v280 = vunpack.c.l.b16 %v211
      %v281 = vunpack.c.l.b16 %v212
      %v282 = vunpack.c.l.b16 %v213
      %v283 = vunpack.c.l.b16 %v214
      %v284 = vunpack.c.l.b16 %v215
      %v285 = vunpack.c.l.b16 %v216
      %v286 = vunpack.c.l.b16 %v217
      %v287 = vunpack.c.l.b16 %v218
      %v288 = vunpack.c.l.b16 %v219
      %v289 = vunpack.c.l.b16 %v220
      %v290 = vunpack.c.l.b16 %v221
      %v291 = vunpack.c.l.b16 %v222
      %v292 = vunpack.c.l.b16 %v223
      %v293 = vunpack.c.l.b16 %v224
      %v294 = vunpack.c.l.b16 %v225
      %v295 = vunpack.c.l.b16 %v226
      %v296 = vunpack.c.l.b16 %v227
      %v297 = vunpack.c.l.b16 %v228
      %v298 = vunpack.c.l.b16 %v229
      %v299 = vunpack.c.l.b16 %v230
      %v300 = vunpack.c.l.b16 %v231
      %v301 = vunpack.c.l.b16 %v232
      %v302 = vunpack.c.l.b16 %v233
      %v303 = vpack.c.b16 %v272, %v271
      %v304 = vpack.c.b16 %v274, %v273
      %v305 = vpack.c.b16 %v276, %v275
      %v306 = vpack.c.b16 %v278, %v277
      %v307 = vpack.c.b16 %v280, %v279
      %v308 = vpack.c.b16 %v282, %v281
      %v309 = vpack.c.b16 %v284, %v283
      %v310 = vpack.c.b16 %v286, %v285
      %v311 = vpack.c.b16 %v288, %v287
      %v312 = vpack.c.b16 %v290, %v289
      %v313 = vpack.c.b16 %v292, %v291
      %v314 = vpack.c.b16 %v294, %v293
      %v315 = vpack.c.b16 %v296, %v295
      %v316 = vpack.c.b16 %v298, %v297
      %v317 = vpack.c.b16 %v300, %v299
      %v318 = vpack.c.b16 %v302, %v301
      %v324 = vunpack.c.l.b16 %v234
      %v325 = vunpack.c.l.b16 %v235
      %v326 = vunpack.c.l.b16 %v236
      %v327 = vunpack.c.l.b16 %v237
      %v328 = vunpack.c.l.b16 %v238
      %v329 = vpack.c.b16 %v325, %v324
      %v330 = vpack.c.b16 %v327, %v326
      %v331 = vpack.c.b16 %v328, %v328
      %vm334 = vcmask 293888
      %v336 = vsel %vm334, %v303, 0
      %v339 = vsel %vm334, %v304, 0
      %v342 = vsel %vm334, %v305, 0
      %v345 = vsel %vm334, %v306, 0
      %v348 = vsel %vm334, %v307, 0
      %v351 = vsel %vm334, %v308, 0
      %v354 = vsel %vm334, %v309, 0
      %v357 = vsel %vm334, %v310, 0
      %v360 = vsel %vm334, %v311, 0
      %v363 = vsel %vm334, %v312, 0
      %v366 = vsel %vm334, %v313, 0
      %v369 = vsel %vm334, %v314, 0
      %v372 = vsel %vm334, %v315, 0
      %v375 = vsel %vm334, %v316, 0
      %v378 = vsel %vm334, %v317, 0
      %v381 = vsel %vm334, %v318, 0
      %vm383 = vcmask 1041408
      %v385 = vsel %vm383, %v331, 0
      %387 = vmatprep.subr.bf16.mxu0 0
      %388 = vmatpush1.bf16.msra.mxu0 %v329
      %389 = vmatprep.subr.bf16.mxu0 0
      %390 = vmatpush1.bf16.msra.mxu0 %v330
      %391 = vmatprep.subr.bf16.mxu0 0
      %392 = vmatpush1.bf16.msra.mxu0 %v385
      %393 = vmatprep.subr.bf16.mxu0 0
      %394 = vmatpush1.bf16.msra.mxu0 0
      %395 = vmatprep.subr.bf16.mxu0 0
      %396 = vmatpush1.bf16.msra.mxu0 0
      %397 = vmatprep.subr.bf16.mxu0 0
      %398 = vmatpush1.bf16.msra.mxu0 0
      %399 = vmatprep.subr.bf16.mxu0 0
      %400 = vmatpush1.bf16.msra.mxu0 0
      %401 = vmatprep.subr.bf16.mxu0 0
      %402 = vmatpush1.bf16.msra.mxu0 0
      %403 = vmatprep.subr.bf16.mxu0 0
      %404 = vmatpush1.bf16.msra.mxu0 0
      %405 = vmatprep.subr.bf16.mxu0 0
      %406 = vmatpush1.bf16.msra.mxu0 0
      %407 = vmatprep.subr.bf16.mxu0 0
      %408 = vmatpush1.bf16.msra.mxu0 0
      %409 = vmatprep.subr.bf16.mxu0 0
      %410 = vmatpush1.bf16.msra.mxu0 0
      %411 = vmatprep.subr.bf16.mxu0 0
      %412 = vmatpush1.bf16.msra.mxu0 0
      %413 = vmatprep.subr.bf16.mxu0 0
      %414 = vmatpush1.bf16.msra.mxu0 0
      %415 = vmatprep.subr.bf16.mxu0 0
      %416 = vmatpush1.bf16.msra.mxu0 0
      %417 = vmatprep.subr.bf16.mxu0 0
      %418 = vmatpush1.bf16.msra.mxu0 0
      %419 = vmatprep.mubr.bf16.mxu0 0
      %420 = vmatmul.mubr.bf16.gmra.mrb[0].mxu0 %v336
      %v421 = vpop.f32.mrb[0].mxu0
      %v422 = vadd.f32 0.0, %v421
      %v423 = vpop.f32.mrb[0].mxu0
      %v424 = vpop.f32.mrb[0].mxu0
      %v425 = vadd.f32 0.0, %v424
      %v426 = vpop.f32.mrb[0].mxu0
      %427 = vmatprep.mubr.bf16.mxu0 0
      %428 = vmatmul.mubr.bf16.gmra.mrb[0].mxu0 %v339
      %v429 = vpop.f32.mrb[0].mxu0
      %v430 = vadd.f32 0.0, %v429
      %v431 = vpop.f32.mrb[0].mxu0
      %v432 = vpop.f32.mrb[0].mxu0
      %v433 = vadd.f32 0.0, %v432
      %v434 = vpop.f32.mrb[0].mxu0
      %435 = vmatprep.mubr.bf16.mxu0 0
      %436 = vmatmul.mubr.bf16.gmra.mrb[0].mxu0 %v342
      %v437 = vpop.f32.mrb[0].mxu0
      %v438 = vadd.f32 0.0, %v437
      %v439 = vpop.f32.mrb[0].mxu0
      %v440 = vpop.f32.mrb[0].mxu0
      %v441 = vadd.f32 0.0, %v440
      %v442 = vpop.f32.mrb[0].mxu0
      %443 = vmatprep.mubr.bf16.mxu0 0
      %444 = vmatmul.mubr.bf16.gmra.mrb[0].mxu0 %v345
      %v445 = vpop.f32.mrb[0].mxu0
      %v446 = vadd.f32 0.0, %v445
      %v447 = vpop.f32.mrb[0].mxu0
      %v448 = vpop.f32.mrb[0].mxu0
      %v449 = vadd.f32 0.0, %v448
      %v450 = vpop.f32.mrb[0].mxu0
      %451 = vmatprep.mubr.bf16.mxu0 0
      %452 = vmatmul.mubr.bf16.gmra.mrb[0].mxu0 %v348
      %v453 = vpop.f32.mrb[0].mxu0
      %v454 = vadd.f32 0.0, %v453
      %v455 = vpop.f32.mrb[0].mxu0
      %v456 = vpop.f32.mrb[0].mxu0
      %v457 = vadd.f32 0.0, %v456
      %v458 = vpop.f32.mrb[0].mxu0
      %459 = vmatprep.mubr.bf16.mxu0 0
      %460 = vmatmul.mubr.bf16.gmra.mrb[0].mxu0 %v351
      %v461 = vpop.f32.mrb[0].mxu0
      %v462 = vadd.f32 0.0, %v461
      %v463 = vpop.f32.mrb[0].mxu0
      %v464 = vpop.f32.mrb[0].mxu0
      %v465 = vadd.f32 0.0, %v464
      %v466 = vpop.f32.mrb[0].mxu0
      %467 = vmatprep.mubr.bf16.mxu0 0
      %468 = vmatmul.mubr.bf16.gmra.mrb[0].mxu0 %v354
      %v469 = vpop.f32.mrb[0].mxu0
      %v470 = vadd.f32 0.0, %v469
      %v471 = vpop.f32.mrb[0].mxu0
      %v472 = vpop.f32.mrb[0].mxu0
      %v473 = vadd.f32 0.0, %v472
      %v474 = vpop.f32.mrb[0].mxu0
      %475 = vmatprep.mubr.bf16.mxu0 0
      %476 = vmatmul.mubr.bf16.gmra.mrb[0].mxu0 %v357
      %v477 = vpop.f32.mrb[0].mxu0
      %v478 = vadd.f32 0.0, %v477
      %v479 = vpop.f32.mrb[0].mxu0
      %v480 = vpop.f32.mrb[0].mxu0
      %v481 = vadd.f32 0.0, %v480
      %v482 = vpop.f32.mrb[0].mxu0
      %483 = vmatprep.mubr.bf16.mxu0 0
      %484 = vmatmul.mubr.bf16.gmra.mrb[0].mxu0 %v360
      %v485 = vpop.f32.mrb[0].mxu0
      %v486 = vadd.f32 0.0, %v485
      %v487 = vpop.f32.mrb[0].mxu0
      %v488 = vpop.f32.mrb[0].mxu0
      %v489 = vadd.f32 0.0, %v488
      %v490 = vpop.f32.mrb[0].mxu0
      %491 = vmatprep.mubr.bf16.mxu0 0
      %492 = vmatmul.mubr.bf16.gmra.mrb[0].mxu0 %v363
      %v493 = vpop.f32.mrb[0].mxu0
      %v494 = vadd.f32 0.0, %v493
      %v495 = vpop.f32.mrb[0].mxu0
      %v496 = vpop.f32.mrb[0].mxu0
      %v497 = vadd.f32 0.0, %v496
      %v498 = vpop.f32.mrb[0].mxu0
      %499 = vmatprep.mubr.bf16.mxu0 0
      %500 = vmatmul.mubr.bf16.gmra.mrb[0].mxu0 %v366
      %v501 = vpop.f32.mrb[0].mxu0
      %v502 = vadd.f32 0.0, %v501
      %v503 = vpop.f32.mrb[0].mxu0
      %v504 = vpop.f32.mrb[0].mxu0
      %v505 = vadd.f32 0.0, %v504
      %v506 = vpop.f32.mrb[0].mxu0
      %507 = vmatprep.mubr.bf16.mxu0 0
      %508 = vmatmul.mubr.bf16.gmra.mrb[0].mxu0 %v369
      %v509 = vpop.f32.mrb[0].mxu0
      %v510 = vadd.f32 0.0, %v509
      %v511 = vpop.f32.mrb[0].mxu0
      %v512 = vpop.f32.mrb[0].mxu0
      %v513 = vadd.f32 0.0, %v512
      %v514 = vpop.f32.mrb[0].mxu0
      %515 = vmatprep.mubr.bf16.mxu0 0
      %516 = vmatmul.mubr.bf16.gmra.mrb[0].mxu0 %v372
      %v517 = vpop.f32.mrb[0].mxu0
      %v518 = vadd.f32 0.0, %v517
      %v519 = vpop.f32.mrb[0].mxu0
      %v520 = vpop.f32.mrb[0].mxu0
      %v521 = vadd.f32 0.0, %v520
      %v522 = vpop.f32.mrb[0].mxu0
      %523 = vmatprep.mubr.bf16.mxu0 0
      %524 = vmatmul.mubr.bf16.gmra.mrb[0].mxu0 %v375
      %v525 = vpop.f32.mrb[0].mxu0
      %v526 = vadd.f32 0.0, %v525
      %v527 = vpop.f32.mrb[0].mxu0
      %v528 = vpop.f32.mrb[0].mxu0
      %v529 = vadd.f32 0.0, %v528
      %v530 = vpop.f32.mrb[0].mxu0
      %531 = vmatprep.mubr.bf16.mxu0 0
      %532 = vmatmul.mubr.bf16.gmra.mrb[0].mxu0 %v378
      %v533 = vpop.f32.mrb[0].mxu0
      %v534 = vadd.f32 0.0, %v533
      %v535 = vpop.f32.mrb[0].mxu0
      %v536 = vpop.f32.mrb[0].mxu0
      %v537 = vadd.f32 0.0, %v536
      %v538 = vpop.f32.mrb[0].mxu0
      %539 = vmatprep.mubr.bf16.mxu0 0
      %540 = vmatmul.mubr.bf16.gmra.mrb[0].mxu0 %v381
      %v541 = vpop.f32.mrb[0].mxu0
      %v542 = vadd.f32 0.0, %v541
      %v543 = vpop.f32.mrb[0].mxu0
      %v544 = vpop.f32.mrb[0].mxu0
      %v545 = vadd.f32 0.0, %v544
      %v546 = vpop.f32.mrb[0].mxu0
      %547 = vdwg.mxu0
      %v548 = vld [vmem:[%s2] sm:$0x1]
      %v550 = vlaneseq
      %v551 = vshrl.u32 %v550, 7
      %v552 = vsub.s32 0, %v551
      %v553 = vrot.slane %v548, %v552
      %v555 = vmul.f32 %v422, %v553
      %v556 = vmul.f32 %v425, %v553
      %v557 = vmul.f32 %v430, %v553
      %v558 = vmul.f32 %v433, %v553
      %v559 = vmul.f32 %v438, %v553
      %v560 = vmul.f32 %v441, %v553
      %v561 = vmul.f32 %v446, %v553
      %v562 = vmul.f32 %v449, %v553
      %v563 = vmul.f32 %v454, %v553
      %v564 = vmul.f32 %v457, %v553
      %v565 = vmul.f32 %v462, %v553
      %v566 = vmul.f32 %v465, %v553
      %v567 = vmul.f32 %v470, %v553
      %v568 = vmul.f32 %v473, %v553
      %v569 = vmul.f32 %v478, %v553
      %v570 = vmul.f32 %v481, %v553
      %v571 = vmul.f32 %v486, %v553
      %v572 = vmul.f32 %v489, %v553
      %v573 = vmul.f32 %v494, %v553
      %v574 = vmul.f32 %v497, %v553
      %v575 = vmul.f32 %v502, %v553
      %v576 = vmul.f32 %v505, %v553
      %v577 = vmul.f32 %v510, %v553
      %v578 = vmul.f32 %v513, %v553
      %v579 = vmul.f32 %v518, %v553
      %v580 = vmul.f32 %v521, %v553
      %v581 = vmul.f32 %v526, %v553
      %v582 = vmul.f32 %v529, %v553
      %v583 = vmul.f32 %v534, %v553
      %v584 = vmul.f32 %v537, %v553
      %v585 = vmul.f32 %v542, %v553
      %v586 = vmul.f32 %v545, %v553
      %v587 = vld [vmem:[%s3] sm:$0x1]
      %v589 = vlaneseq
      %v590 = vshrl.u32 %v589, 7
      %v591 = vsub.s32 0, %v590
      %v592 = vrot.slane %v587, %v591
      %v594 = vadd.f32 %v555, %v592
      %v595 = vadd.f32 %v556, %v592
      %v596 = vadd.f32 %v557, %v592
      %v597 = vadd.f32 %v558, %v592
      %v598 = vadd.f32 %v559, %v592
      %v599 = vadd.f32 %v560, %v592
      %v600 = vadd.f32 %v561, %v592
      %v601 = vadd.f32 %v562, %v592
      %v602 = vadd.f32 %v563, %v592
      %v603 = vadd.f32 %v564, %v592
      %v604 = vadd.f32 %v565, %v592
      %v605 = vadd.f32 %v566, %v592
      %v606 = vadd.f32 %v567, %v592
      %v607 = vadd.f32 %v568, %v592
      %v608 = vadd.f32 %v569, %v592
      %v609 = vadd.f32 %v570, %v592
      %v610 = vadd.f32 %v571, %v592
      %v611 = vadd.f32 %v572, %v592
      %v612 = vadd.f32 %v573, %v592
      %v613 = vadd.f32 %v574, %v592
      %v614 = vadd.f32 %v575, %v592
      %v615 = vadd.f32 %v576, %v592
      %v616 = vadd.f32 %v577, %v592
      %v617 = vadd.f32 %v578, %v592
      %v618 = vadd.f32 %v579, %v592
      %v619 = vadd.f32 %v580, %v592
      %v620 = vadd.f32 %v581, %v592
      %v621 = vadd.f32 %v582, %v592
      %v622 = vadd.f32 %v583, %v592
      %v623 = vadd.f32 %v584, %v592
      %v624 = vadd.f32 %v585, %v592
      %v625 = vadd.f32 %v586, %v592
      %v626 = vmax.f32 %v594, 0.0
      %v627 = vmax.f32 %v595, 0.0
      %v628 = vmax.f32 %v596, 0.0
      %v629 = vmax.f32 %v597, 0.0
      %v630 = vmax.f32 %v598, 0.0
      %v631 = vmax.f32 %v599, 0.0
      %v632 = vmax.f32 %v600, 0.0
      %v633 = vmax.f32 %v601, 0.0
      %v634 = vmax.f32 %v602, 0.0
      %v635 = vmax.f32 %v603, 0.0
      %v636 = vmax.f32 %v604, 0.0
      %v637 = vmax.f32 %v605, 0.0
      %v638 = vmax.f32 %v606, 0.0
      %v639 = vmax.f32 %v607, 0.0
      %v640 = vmax.f32 %v608, 0.0
      %v641 = vmax.f32 %v609, 0.0
      %v642 = vmax.f32 %v610, 0.0
      %v643 = vmax.f32 %v611, 0.0
      %v644 = vmax.f32 %v612, 0.0
      %v645 = vmax.f32 %v613, 0.0
      %v646 = vmax.f32 %v614, 0.0
      %v647 = vmax.f32 %v615, 0.0
      %v648 = vmax.f32 %v616, 0.0
      %v649 = vmax.f32 %v617, 0.0
      %v650 = vmax.f32 %v618, 0.0
      %v651 = vmax.f32 %v619, 0.0
      %v652 = vmax.f32 %v620, 0.0
      %v653 = vmax.f32 %v621, 0.0
      %v654 = vmax.f32 %v622, 0.0
      %v655 = vmax.f32 %v623, 0.0
      %v656 = vmax.f32 %v624, 0.0
      %v657 = vmax.f32 %v625, 0.0
      %vm658 = vcmask 64512
      %659 = vst.msk [vmem:[%s199] sm:$0xff] %vm658, %v626
      %660 = vst.msk [vmem:[%s199 + $0x8] sm:$0xff] %vm658, %v627
      %661 = vst.msk [vmem:[%s199 + $0x10] sm:$0xff] %vm658, %v628
      %662 = vst.msk [vmem:[%s199 + $0x18] sm:$0xff] %vm658, %v629
      %663 = vst.msk [vmem:[%s199 + $0x20] sm:$0xff] %vm658, %v630
      %664 = vst.msk [vmem:[%s199 + $0x28] sm:$0xff] %vm658, %v631
      %665 = vst.msk [vmem:[%s199 + $0x30] sm:$0xff] %vm658, %v632
      %666 = vst.msk [vmem:[%s199 + $0x38] sm:$0xff] %vm658, %v633
      %667 = vst.msk [vmem:[%s199 + $0x40] sm:$0xff] %vm658, %v634
      %668 = vst.msk [vmem:[%s199 + $0x48] sm:$0xff] %vm658, %v635
      %669 = vst.msk [vmem:[%s199 + $0x50] sm:$0xff] %vm658, %v636
      %670 = vst.msk [vmem:[%s199 + $0x58] sm:$0xff] %vm658, %v637
      %671 = vst.msk [vmem:[%s199 + $0x60] sm:$0xff] %vm658, %v638
      %672 = vst.msk [vmem:[%s199 + $0x68] sm:$0xff] %vm658, %v639
      %673 = vst.msk [vmem:[%s199 + $0x70] sm:$0xff] %vm658, %v640
      %674 = vst.msk [vmem:[%s199 + $0x78] sm:$0xff] %vm658, %v641
      %675 = vst.msk [vmem:[%s199 + $0x80] sm:$0xff] %vm658, %v642
      %676 = vst.msk [vmem:[%s199 + $0x88] sm:$0xff] %vm658, %v643
      %677 = vst.msk [vmem:[%s199 + $0x90] sm:$0xff] %vm658, %v644
      %678 = vst.msk [vmem:[%s199 + $0x98] sm:$0xff] %vm658, %v645
      %679 = vst.msk [vmem:[%s199 + $0xa0] sm:$0xff] %vm658, %v646
      %680 = vst.msk [vmem:[%s199 + $0xa8] sm:$0xff] %vm658, %v647
      %681 = vst.msk [vmem:[%s199 + $0xb0] sm:$0xff] %vm658, %v648
      %682 = vst.msk [vmem:[%s199 + $0xb8] sm:$0xff] %vm658, %v649
      %683 = vst.msk [vmem:[%s199 + $0xc0] sm:$0xff] %vm658, %v650
      %684 = vst.msk [vmem:[%s199 + $0xc8] sm:$0xff] %vm658, %v651
      %685 = vst.msk [vmem:[%s199 + $0xd0] sm:$0xff] %vm658, %v652
      %686 = vst.msk [vmem:[%s199 + $0xd8] sm:$0xff] %vm658, %v653
      %687 = vst.msk [vmem:[%s199 + $0xe0] sm:$0xff] %vm658, %v654
      %688 = vst.msk [vmem:[%s199 + $0xe8] sm:$0xff] %vm658, %v655
      %689 = vst.msk [vmem:[%s199 + $0xf0] sm:$0xff] %vm658, %v656
      %690 = vst.msk [vmem:[%s199 + $0xf8] sm:$0xff] %vm658, %v657
      %s691 = smul.u32 32, %s15
      %p692 = scmp.lt.s32.totalorder %s691, 63
      %s693 = scalar_select %p692, %s691, 63
      %s694 = smul.addr %s693, 8
      %s695 = scalar_lea.vmem %s4, %s694
      // Predicated region
      $region37: #{resnet2_forward.5} parent=35 // pred_check
        %p696 = pneg %p122
      $region38: #{resnet2_forward.5} parent=35 // pred_check_branch
        %698 = sbr.rel (%p696) target = $region40
      $region39: #{resnet2_forward.5} parent=35 // pred_region
        %s699 = smul.u32 32, %s15
      $region40: #{resnet2_forward.5} parent=35 // pred_fallthru
        _
    $region36: #{resnet2_forward.5} parent=5 // pred_fallthru
      _
    %p700 = scmp.le.s32.totalorder 2, %s10
    // Predicated region
    $region41: #{resnet2_forward.5} parent=5 // pred_check
      %p701 = pneg %p700
    $region42: #{resnet2_forward.5} parent=5 // pred_check_branch
      %703 = sbr.rel (%p701) target = $region44
    $region43: #{resnet2_forward.5} parent=5 // pred_region
      %s704 = ssub.s32 %s10, 2
      // Predicated region
      $region45: #{resnet2_forward.5} parent=43 // pred_check
        %p705 = pneg %p128
      $region46: #{resnet2_forward.5} parent=43 // pred_check_branch
        %707 = sbr.rel (%p705) target = $region48
      $region47: #{resnet2_forward.5} parent=43 // pred_region
        %s708 = smul.u32 32, %s16
        %p709 = scmp.lt.s32.totalorder %s708, 63
        %s710 = scalar_select %p709, %s708, 63
        %s711 = smul.addr %s710, 8
        %s712 = scalar_lea.vmem %s4, %s711
      $region48: #{resnet2_forward.5} parent=43 // pred_fallthru
        _
    $region44: #{resnet2_forward.5} parent=5 // pred_fallthru
      _
  $region6: #{resnet2_forward.5} parent=0 // loop_footer
    %s14 = sadd.s32 1, %s10
  $region7: #{resnet2_forward.5} parent=0 // loop_footer_branch
    %9 = sbr.rel target = $region3
  $region8: #{resnet2_forward.5} parent=0 // loop_exit
    _

// kernel: resnet2_forward.4
$region0: #{resnet2_forward.4}
  #allocation0 [shape = 'u32[]', space=smem, size = 0x4, offset = 0x4, fixed_abs, tag = 'smem constant byte address 0x4 - core index']
  #allocation1 [shape = 'u32[144,128]{1,0:T(1,128)}', space=vmem, size = 0x12000, scoped, tag = 'internal scratch']
  %s0 = inlined_call_operand.vmem [shape: bf16[128,36], index: 0, kind: input, shape index: {}]
  %s1 = inlined_call_operand.vmem [shape: bf16[36,8], index: 1, kind: input, shape index: {}]
  %s2 = inlined_call_operand.vmem [shape: f32[1,8], index: 2, kind: input, shape index: {}]
  %s3 = inlined_call_operand.vmem [shape: f32[1,8], index: 3, kind: input, shape index: {}]
  %s4 = inlined_call_operand.vmem [shape: f32[128,8], index: 4, kind: output, shape index: {}]
  %s5 = sld [smem:[#allocation0]]
  $region26: #{resnet2_forward.4} parent=0
    _
  %s7 = ssub.s32 1, %s5
  %s8 = scalar_select 0, %s7, %s5
  // Predicated region
  $region2: #{resnet2_forward.4} parent=0 // pred_check
    _
  $region3: #{resnet2_forward.4} parent=0 // pred_check_branch
    %10 = sbr.rel (0) target = $region5
  $region4: #{resnet2_forward.4} parent=0 // pred_region
    _
  $region5: #{resnet2_forward.4} parent=0 // pred_fallthru
    _
  // Predicated region
  $region6: #{resnet2_forward.4} parent=0 // pred_check
    _
  $region7: #{resnet2_forward.4} parent=0 // pred_check_branch
    %12 = sbr.rel (0) target = $region9
  $region8: #{resnet2_forward.4} parent=0 // pred_region
    _
  $region9: #{resnet2_forward.4} parent=0 // pred_fallthru
    _
  // Predicated region
  $region10: #{resnet2_forward.4} parent=0 // pred_check
    _
  $region11: #{resnet2_forward.4} parent=0 // pred_check_branch
    %14 = sbr.rel (0) target = $region13
  $region12: #{resnet2_forward.4} parent=0 // pred_region
    _
  $region13: #{resnet2_forward.4} parent=0 // pred_fallthru
    _
  // Predicated region
  $region14: #{resnet2_forward.4} parent=0 // pred_check
    _
  $region15: #{resnet2_forward.4} parent=0 // pred_check_branch
    %16 = sbr.rel (0) target = $region17
  $region16: #{resnet2_forward.4} parent=0 // pred_region
    _
  $region17: #{resnet2_forward.4} parent=0 // pred_fallthru
    _
  %v18 = vld [vmem:[%s0] sm:$0xf]
  %v19 = vld [vmem:[%s0 + $0x4] sm:$0xf]
  %v20 = vld [vmem:[%s0 + $0x8] sm:$0xf]
  %v21 = vld [vmem:[%s0 + $0xc] sm:$0xf]
  %v22 = vld [vmem:[%s0 + $0x10] sm:$0xf]
  %v23 = vld [vmem:[%s0 + $0x14] sm:$0xf]
  %v24 = vld [vmem:[%s0 + $0x18] sm:$0xf]
  %v25 = vld [vmem:[%s0 + $0x1c] sm:$0xf]
  %v26 = vld [vmem:[%s0 + $0x20] sm:$0xf]
  %v27 = vld [vmem:[%s0 + $0x24] sm:$0xf]
  %v28 = vld [vmem:[%s0 + $0x28] sm:$0xf]
  %v29 = vld [vmem:[%s0 + $0x2c] sm:$0xf]
  %v30 = vld [vmem:[%s0 + $0x30] sm:$0xf]
  %v31 = vld [vmem:[%s0 + $0x34] sm:$0xf]
  %v32 = vld [vmem:[%s0 + $0x38] sm:$0xf]
  %v33 = vld [vmem:[%s0 + $0x3c] sm:$0xf]
  %v34 = vld [vmem:[%s1] sm:$0xf]
  %v35 = vld [vmem:[%s1 + $0x4] sm:$0xf]
  %v36 = vld [vmem:[%s1 + $0x8] sm:$0xf]
  %v37 = vld [vmem:[%s1 + $0xc] sm:$0xf]
  %v38 = vld [vmem:[%s1 + $0x10] sm:$0x3]
  %v55 = vunpack.c.l.b16 %v18
  %v56 = vunpack.c.l.b16 %v19
  %v57 = vunpack.c.l.b16 %v20
  %v58 = vunpack.c.l.b16 %v21
  %v59 = vunpack.c.l.b16 %v22
  %v60 = vunpack.c.l.b16 %v23
  %v61 = vunpack.c.l.b16 %v24
  %v62 = vunpack.c.l.b16 %v25
  %v63 = vunpack.c.l.b16 %v26
  %v64 = vunpack.c.l.b16 %v27
  %v65 = vunpack.c.l.b16 %v28
  %v66 = vunpack.c.l.b16 %v29
  %v67 = vunpack.c.l.b16 %v30
  %v68 = vunpack.c.l.b16 %v31
  %v69 = vunpack.c.l.b16 %v32
  %v70 = vunpack.c.l.b16 %v33
  %v71 = vpack.c.b16 %v56, %v55
  %v72 = vpack.c.b16 %v58, %v57
  %v73 = vpack.c.b16 %v60, %v59
  %v74 = vpack.c.b16 %v62, %v61
  %v75 = vpack.c.b16 %v64, %v63
  %v76 = vpack.c.b16 %v66, %v65
  %v77 = vpack.c.b16 %v68, %v67
  %v78 = vpack.c.b16 %v70, %v69
  %v84 = vunpack.c.l.b16 %v34
  %v85 = vunpack.c.l.b16 %v35
  %v86 = vunpack.c.l.b16 %v36
  %v87 = vunpack.c.l.b16 %v37
  %v88 = vunpack.c.l.b16 %v38
  %v89 = vpack.c.b16 %v85, %v84
  %v90 = vpack.c.b16 %v87, %v86
  %v91 = vpack.c.b16 %v88, %v88
  %vm94 = vcmask 293888
  %v96 = vsel %vm94, %v71, 0
  %v99 = vsel %vm94, %v72, 0
  %v102 = vsel %vm94, %v73, 0
  %v105 = vsel %vm94, %v74, 0
  %v108 = vsel %vm94, %v75, 0
  %v111 = vsel %vm94, %v76, 0
  %v114 = vsel %vm94, %v77, 0
  %v117 = vsel %vm94, %v78, 0
  %vm119 = vcmask 1041408
  %v121 = vsel %vm119, %v91, 0
  %123 = vmatprep.subr.bf16.mxu0 0
  %124 = vmatpush1.bf16.msra.mxu0 %v89
  %125 = vmatprep.subr.bf16.mxu0 0
  %126 = vmatpush1.bf16.msra.mxu0 %v90
  %127 = vmatprep.subr.bf16.mxu0 0
  %128 = vmatpush1.bf16.msra.mxu0 %v121
  %129 = vmatprep.subr.bf16.mxu0 0
  %130 = vmatpush1.bf16.msra.mxu0 0
  %131 = vmatprep.subr.bf16.mxu0 0
  %132 = vmatpush1.bf16.msra.mxu0 0
  %133 = vmatprep.subr.bf16.mxu0 0
  %134 = vmatpush1.bf16.msra.mxu0 0
  %135 = vmatprep.subr.bf16.mxu0 0
  %136 = vmatpush1.bf16.msra.mxu0 0
  %137 = vmatprep.subr.bf16.mxu0 0
  %138 = vmatpush1.bf16.msra.mxu0 0
  %139 = vmatprep.subr.bf16.mxu0 0
  %140 = vmatpush1.bf16.msra.mxu0 0
  %141 = vmatprep.subr.bf16.mxu0 0
  %142 = vmatpush1.bf16.msra.mxu0 0
  %143 = vmatprep.subr.bf16.mxu0 0
  %144 = vmatpush1.bf16.msra.mxu0 0
  %145 = vmatprep.subr.bf16.mxu0 0
  %146 = vmatpush1.bf16.msra.mxu0 0
  %147 = vmatprep.subr.bf16.mxu0 0
  %148 = vmatpush1.bf16.msra.mxu0 0
  %149 = vmatprep.subr.bf16.mxu0 0
  %150 = vmatpush1.bf16.msra.mxu0 0
  %151 = vmatprep.subr.bf16.mxu0 0
  %152 = vmatpush1.bf16.msra.mxu0 0
  %153 = vmatprep.subr.bf16.mxu0 0
  %154 = vmatpush1.bf16.msra.mxu0 0
  %155 = vmatprep.mubr.bf16.mxu0 0
  %156 = vmatmul.mubr.bf16.gmra.mrb[0].mxu0 %v96
  %v157 = vpop.f32.mrb[0].mxu0
  %v158 = vadd.f32 0.0, %v157
  %v159 = vpop.f32.mrb[0].mxu0
  %v160 = vpop.f32.mrb[0].mxu0
  %v161 = vadd.f32 0.0, %v160
  %v162 = vpop.f32.mrb[0].mxu0
  %163 = vmatprep.mubr.bf16.mxu0 0
  %164 = vmatmul.mubr.bf16.gmra.mrb[0].mxu0 %v99
  %v165 = vpop.f32.mrb[0].mxu0
  %v166 = vadd.f32 0.0, %v165
  %v167 = vpop.f32.mrb[0].mxu0
  %v168 = vpop.f32.mrb[0].mxu0
  %v169 = vadd.f32 0.0, %v168
  %v170 = vpop.f32.mrb[0].mxu0
  %171 = vmatprep.mubr.bf16.mxu0 0
  %172 = vmatmul.mubr.bf16.gmra.mrb[0].mxu0 %v102
  %v173 = vpop.f32.mrb[0].mxu0
  %v174 = vadd.f32 0.0, %v173
  %v175 = vpop.f32.mrb[0].mxu0
  %v176 = vpop.f32.mrb[0].mxu0
  %v177 = vadd.f32 0.0, %v176
  %v178 = vpop.f32.mrb[0].mxu0
  %179 = vmatprep.mubr.bf16.mxu0 0
  %180 = vmatmul.mubr.bf16.gmra.mrb[0].mxu0 %v105
  %v181 = vpop.f32.mrb[0].mxu0
  %v182 = vadd.f32 0.0, %v181
  %v183 = vpop.f32.mrb[0].mxu0
  %v184 = vpop.f32.mrb[0].mxu0
  %v185 = vadd.f32 0.0, %v184
  %v186 = vpop.f32.mrb[0].mxu0
  %187 = vmatprep.mubr.bf16.mxu0 0
  %188 = vmatmul.mubr.bf16.gmra.mrb[0].mxu0 %v108
  %v189 = vpop.f32.mrb[0].mxu0
  %v190 = vadd.f32 0.0, %v189
  %v191 = vpop.f32.mrb[0].mxu0
  %v192 = vpop.f32.mrb[0].mxu0
  %v193 = vadd.f32 0.0, %v192
  %v194 = vpop.f32.mrb[0].mxu0
  %195 = vmatprep.mubr.bf16.mxu0 0
  %196 = vmatmul.mubr.bf16.gmra.mrb[0].mxu0 %v111
  %v197 = vpop.f32.mrb[0].mxu0
  %v198 = vadd.f32 0.0, %v197
  %v199 = vpop.f32.mrb[0].mxu0
  %v200 = vpop.f32.mrb[0].mxu0
  %v201 = vadd.f32 0.0, %v200
  %v202 = vpop.f32.mrb[0].mxu0
  %203 = vmatprep.mubr.bf16.mxu0 0
  %204 = vmatmul.mubr.bf16.gmra.mrb[0].mxu0 %v114
  %v205 = vpop.f32.mrb[0].mxu0
  %v206 = vadd.f32 0.0, %v205
  %v207 = vpop.f32.mrb[0].mxu0
  %v208 = vpop.f32.mrb[0].mxu0
  %v209 = vadd.f32 0.0, %v208
  %v210 = vpop.f32.mrb[0].mxu0
  %211 = vmatprep.mubr.bf16.mxu0 0
  %212 = vmatmul.mubr.bf16.gmra.mrb[0].mxu0 %v117
  %v213 = vpop.f32.mrb[0].mxu0
  %v214 = vadd.f32 0.0, %v213
  %v215 = vpop.f32.mrb[0].mxu0
  %v216 = vpop.f32.mrb[0].mxu0
  %v217 = vadd.f32 0.0, %v216
  %v218 = vpop.f32.mrb[0].mxu0
  %219 = vdwg.mxu0
  %v220 = vld [vmem:[%s2] sm:$0x1]
  %v222 = vlaneseq
  %v223 = vshrl.u32 %v222, 7
  %v224 = vsub.s32 0, %v223
  %v225 = vrot.slane %v220, %v224
  %v227 = vmul.f32 %v158, %v225
  %v228 = vmul.f32 %v161, %v225
  %v229 = vmul.f32 %v166, %v225
  %v230 = vmul.f32 %v169, %v225
  %v231 = vmul.f32 %v174, %v225
  %v232 = vmul.f32 %v177, %v225
  %v233 = vmul.f32 %v182, %v225
  %v234 = vmul.f32 %v185, %v225
  %v235 = vmul.f32 %v190, %v225
  %v236 = vmul.f32 %v193, %v225
  %v237 = vmul.f32 %v198, %v225
  %v238 = vmul.f32 %v201, %v225
  %v239 = vmul.f32 %v206, %v225
  %v240 = vmul.f32 %v209, %v225
  %v241 = vmul.f32 %v214, %v225
  %v242 = vmul.f32 %v217, %v225
  %v243 = vld [vmem:[%s3] sm:$0x1]
  %v245 = vlaneseq
  %v246 = vshrl.u32 %v245, 7
  %v247 = vsub.s32 0, %v246
  %v248 = vrot.slane %v243, %v247
  %v250 = vadd.f32 %v227, %v248
  %v251 = vadd.f32 %v228, %v248
  %v252 = vadd.f32 %v229, %v248
  %v253 = vadd.f32 %v230, %v248
  %v254 = vadd.f32 %v231, %v248
  %v255 = vadd.f32 %v232, %v248
  %v256 = vadd.f32 %v233, %v248
  %v257 = vadd.f32 %v234, %v248
  %v258 = vadd.f32 %v235, %v248
  %v259 = vadd.f32 %v236, %v248
  %v260 = vadd.f32 %v237, %v248
  %v261 = vadd.f32 %v238, %v248
  %v262 = vadd.f32 %v239, %v248
  %v263 = vadd.f32 %v240, %v248
  %v264 = vadd.f32 %v241, %v248
  %v265 = vadd.f32 %v242, %v248
  %v266 = vmax.f32 %v250, 0.0
  %v267 = vmax.f32 %v251, 0.0
  %v268 = vmax.f32 %v252, 0.0
  %v269 = vmax.f32 %v253, 0.0
  %v270 = vmax.f32 %v254, 0.0
  %v271 = vmax.f32 %v255, 0.0
  %v272 = vmax.f32 %v256, 0.0
  %v273 = vmax.f32 %v257, 0.0
  %v274 = vmax.f32 %v258, 0.0
  %v275 = vmax.f32 %v259, 0.0
  %v276 = vmax.f32 %v260, 0.0
  %v277 = vmax.f32 %v261, 0.0
  %v278 = vmax.f32 %v262, 0.0
  %v279 = vmax.f32 %v263, 0.0
  %v280 = vmax.f32 %v264, 0.0
  %v281 = vmax.f32 %v265, 0.0
  %vm282 = vcmask 64512
  %283 = vst.msk [vmem:[%s4] sm:$0xff] %vm282, %v266
  %284 = vst.msk [vmem:[%s4 + $0x8] sm:$0xff] %vm282, %v267
  %285 = vst.msk [vmem:[%s4 + $0x10] sm:$0xff] %vm282, %v268
  %286 = vst.msk [vmem:[%s4 + $0x18] sm:$0xff] %vm282, %v269
  %287 = vst.msk [vmem:[%s4 + $0x20] sm:$0xff] %vm282, %v270
  %288 = vst.msk [vmem:[%s4 + $0x28] sm:$0xff] %vm282, %v271
  %289 = vst.msk [vmem:[%s4 + $0x30] sm:$0xff] %vm282, %v272
  %290 = vst.msk [vmem:[%s4 + $0x38] sm:$0xff] %vm282, %v273
  %291 = vst.msk [vmem:[%s4 + $0x40] sm:$0xff] %vm282, %v274
  %292 = vst.msk [vmem:[%s4 + $0x48] sm:$0xff] %vm282, %v275
  %293 = vst.msk [vmem:[%s4 + $0x50] sm:$0xff] %vm282, %v276
  %294 = vst.msk [vmem:[%s4 + $0x58] sm:$0xff] %vm282, %v277
  %295 = vst.msk [vmem:[%s4 + $0x60] sm:$0xff] %vm282, %v278
  %296 = vst.msk [vmem:[%s4 + $0x68] sm:$0xff] %vm282, %v279
  %297 = vst.msk [vmem:[%s4 + $0x70] sm:$0xff] %vm282, %v280
  %298 = vst.msk [vmem:[%s4 + $0x78] sm:$0xff] %vm282, %v281
  // Predicated region
  $region18: #{resnet2_forward.4} parent=0 // pred_check
    _
  $region19: #{resnet2_forward.4} parent=0 // pred_check_branch
    %300 = sbr.rel (0) target = $region21
  $region20: #{resnet2_forward.4} parent=0 // pred_region
    _
  $region21: #{resnet2_forward.4} parent=0 // pred_fallthru
    _
  // Predicated region
  $region22: #{resnet2_forward.4} parent=0 // pred_check
    _
  $region23: #{resnet2_forward.4} parent=0 // pred_check_branch
    %302 = sbr.rel (0) target = $region25
  $region24: #{resnet2_forward.4} parent=0 // pred_region
    _
  $region25: #{resnet2_forward.4} parent=0 // pred_fallthru
    _

// kernel: resnet2_forward.7
$region0: #{resnet2_forward.7}
  #allocation0 [shape = 'u32[]', space=smem, size = 0x4, offset = 0x4, fixed_abs, tag = 'smem constant byte address 0x4 - core index']
  #allocation1 [shape = 'u32[144,128]{1,0:T(1,128)}', space=vmem, size = 0x12000, scoped, tag = 'internal scratch']
  %s0 = inlined_call_operand.vmem [shape: bf16[128,72], index: 0, kind: input, shape index: {}]
  %s1 = inlined_call_operand.vmem [shape: bf16[72,8], index: 1, kind: input, shape index: {}]
  %s2 = inlined_call_operand.vmem [shape: f32[1,8], index: 2, kind: input, shape index: {}]
  %s3 = inlined_call_operand.vmem [shape: f32[1,8], index: 3, kind: input, shape index: {}]
  %s4 = inlined_call_operand.vmem [shape: f32[128,8], index: 4, kind: input, shape index: {}]
  %s5 = inlined_call_operand.vmem [shape: f32[128,8], index: 5, kind: output, shape index: {}]
  %s6 = sld [smem:[#allocation0]]
  $region30: #{resnet2_forward.7} parent=0
    _
  %s8 = ssub.s32 1, %s6
  %s9 = scalar_select 0, %s8, %s6
  // Predicated region
  $region2: #{resnet2_forward.7} parent=0 // pred_check
    _
  $region3: #{resnet2_forward.7} parent=0 // pred_check_branch
    %11 = sbr.rel (0) target = $region5
  $region4: #{resnet2_forward.7} parent=0 // pred_region
    _
  $region5: #{resnet2_forward.7} parent=0 // pred_fallthru
    _
  // Predicated region
  $region6: #{resnet2_forward.7} parent=0 // pred_check
    _
  $region7: #{resnet2_forward.7} parent=0 // pred_check_branch
    %13 = sbr.rel (0) target = $region9
  $region8: #{resnet2_forward.7} parent=0 // pred_region
    _
  $region9: #{resnet2_forward.7} parent=0 // pred_fallthru
    _
  // Predicated region
  $region10: #{resnet2_forward.7} parent=0 // pred_check
    _
  $region11: #{resnet2_forward.7} parent=0 // pred_check_branch
    %15 = sbr.rel (0) target = $region13
  $region12: #{resnet2_forward.7} parent=0 // pred_region
    _
  $region13: #{resnet2_forward.7} parent=0 // pred_fallthru
    _
  // Predicated region
  $region14: #{resnet2_forward.7} parent=0 // pred_check
    _
  $region15: #{resnet2_forward.7} parent=0 // pred_check_branch
    %17 = sbr.rel (0) target = $region17
  $region16: #{resnet2_forward.7} parent=0 // pred_region
    _
  $region17: #{resnet2_forward.7} parent=0 // pred_fallthru
    _
  // Predicated region
  $region18: #{resnet2_forward.7} parent=0 // pred_check
    _
  $region19: #{resnet2_forward.7} parent=0 // pred_check_branch
    %19 = sbr.rel (0) target = $region21
  $region20: #{resnet2_forward.7} parent=0 // pred_region
    _
  $region21: #{resnet2_forward.7} parent=0 // pred_fallthru
    _
  %v21 = vld [vmem:[%s0] sm:$0xf]
  %v22 = vld [vmem:[%s0 + $0x4] sm:$0xf]
  %v23 = vld [vmem:[%s0 + $0x8] sm:$0xf]
  %v24 = vld [vmem:[%s0 + $0xc] sm:$0xf]
  %v25 = vld [vmem:[%s0 + $0x10] sm:$0xf]
  %v26 = vld [vmem:[%s0 + $0x14] sm:$0xf]
  %v27 = vld [vmem:[%s0 + $0x18] sm:$0xf]
  %v28 = vld [vmem:[%s0 + $0x1c] sm:$0xf]
  %v29 = vld [vmem:[%s0 + $0x20] sm:$0xf]
  %v30 = vld [vmem:[%s0 + $0x24] sm:$0xf]
  %v31 = vld [vmem:[%s0 + $0x28] sm:$0xf]
  %v32 = vld [vmem:[%s0 + $0x2c] sm:$0xf]
  %v33 = vld [vmem:[%s0 + $0x30] sm:$0xf]
  %v34 = vld [vmem:[%s0 + $0x34] sm:$0xf]
  %v35 = vld [vmem:[%s0 + $0x38] sm:$0xf]
  %v36 = vld [vmem:[%s0 + $0x3c] sm:$0xf]
  %v37 = vld [vmem:[%s1] sm:$0xf]
  %v38 = vld [vmem:[%s1 + $0x4] sm:$0xf]
  %v39 = vld [vmem:[%s1 + $0x8] sm:$0xf]
  %v40 = vld [vmem:[%s1 + $0xc] sm:$0xf]
  %v41 = vld [vmem:[%s1 + $0x10] sm:$0xf]
  %v42 = vld [vmem:[%s1 + $0x14] sm:$0xf]
  %v43 = vld [vmem:[%s1 + $0x18] sm:$0xf]
  %v44 = vld [vmem:[%s1 + $0x1c] sm:$0xf]
  %v45 = vld [vmem:[%s1 + $0x20] sm:$0xf]
  %v62 = vunpack.c.l.b16 %v21
  %v63 = vunpack.c.l.b16 %v22
  %v64 = vunpack.c.l.b16 %v23
  %v65 = vunpack.c.l.b16 %v24
  %v66 = vunpack.c.l.b16 %v25
  %v67 = vunpack.c.l.b16 %v26
  %v68 = vunpack.c.l.b16 %v27
  %v69 = vunpack.c.l.b16 %v28
  %v70 = vunpack.c.l.b16 %v29
  %v71 = vunpack.c.l.b16 %v30
  %v72 = vunpack.c.l.b16 %v31
  %v73 = vunpack.c.l.b16 %v32
  %v74 = vunpack.c.l.b16 %v33
  %v75 = vunpack.c.l.b16 %v34
  %v76 = vunpack.c.l.b16 %v35
  %v77 = vunpack.c.l.b16 %v36
  %v78 = vpack.c.b16 %v63, %v62
  %v79 = vpack.c.b16 %v65, %v64
  %v80 = vpack.c.b16 %v67, %v66
  %v81 = vpack.c.b16 %v69, %v68
  %v82 = vpack.c.b16 %v71, %v70
  %v83 = vpack.c.b16 %v73, %v72
  %v84 = vpack.c.b16 %v75, %v74
  %v85 = vpack.c.b16 %v77, %v76
  %v95 = vunpack.c.l.b16 %v37
  %v96 = vunpack.c.l.b16 %v38
  %v97 = vunpack.c.l.b16 %v39
  %v98 = vunpack.c.l.b16 %v40
  %v99 = vunpack.c.l.b16 %v41
  %v100 = vunpack.c.l.b16 %v42
  %v101 = vunpack.c.l.b16 %v43
  %v102 = vunpack.c.l.b16 %v44
  %v103 = vunpack.c.l.b16 %v45
  %v104 = vpack.c.b16 %v96, %v95
  %v105 = vpack.c.b16 %v98, %v97
  %v106 = vpack.c.b16 %v100, %v99
  %v107 = vpack.c.b16 %v102, %v101
  %v108 = vpack.c.b16 %v103, %v103
  %vm113 = vcmask 588800
  %v115 = vsel %vm113, %v78, 0
  %v118 = vsel %vm113, %v79, 0
  %v121 = vsel %vm113, %v80, 0
  %v124 = vsel %vm113, %v81, 0
  %v127 = vsel %vm113, %v82, 0
  %v130 = vsel %vm113, %v83, 0
  %v133 = vsel %vm113, %v84, 0
  %v136 = vsel %vm113, %v85, 0
  %vm138 = vcmask 1043456
  %v140 = vsel %vm138, %v108, 0
  %142 = vmatprep.subr.bf16.mxu0 0
  %143 = vmatpush1.bf16.msra.mxu0 %v104
  %144 = vmatprep.subr.bf16.mxu0 0
  %145 = vmatpush1.bf16.msra.mxu0 %v105
  %146 = vmatprep.subr.bf16.mxu0 0
  %147 = vmatpush1.bf16.msra.mxu0 %v106
  %148 = vmatprep.subr.bf16.mxu0 0
  %149 = vmatpush1.bf16.msra.mxu0 %v107
  %150 = vmatprep.subr.bf16.mxu0 0
  %151 = vmatpush1.bf16.msra.mxu0 %v140
  %152 = vmatprep.subr.bf16.mxu0 0
  %153 = vmatpush1.bf16.msra.mxu0 0
  %154 = vmatprep.subr.bf16.mxu0 0
  %155 = vmatpush1.bf16.msra.mxu0 0
  %156 = vmatprep.subr.bf16.mxu0 0
  %157 = vmatpush1.bf16.msra.mxu0 0
  %158 = vmatprep.subr.bf16.mxu0 0
  %159 = vmatpush1.bf16.msra.mxu0 0
  %160 = vmatprep.subr.bf16.mxu0 0
  %161 = vmatpush1.bf16.msra.mxu0 0
  %162 = vmatprep.subr.bf16.mxu0 0
  %163 = vmatpush1.bf16.msra.mxu0 0
  %164 = vmatprep.subr.bf16.mxu0 0
  %165 = vmatpush1.bf16.msra.mxu0 0
  %166 = vmatprep.subr.bf16.mxu0 0
  %167 = vmatpush1.bf16.msra.mxu0 0
  %168 = vmatprep.subr.bf16.mxu0 0
  %169 = vmatpush1.bf16.msra.mxu0 0
  %170 = vmatprep.subr.bf16.mxu0 0
  %171 = vmatpush1.bf16.msra.mxu0 0
  %172 = vmatprep.subr.bf16.mxu0 0
  %173 = vmatpush1.bf16.msra.mxu0 0
  %174 = vmatprep.mubr.bf16.mxu0 0
  %175 = vmatmul.mubr.bf16.gmra.mrb[0].mxu0 %v115
  %v176 = vpop.f32.mrb[0].mxu0
  %v177 = vadd.f32 0.0, %v176
  %v178 = vpop.f32.mrb[0].mxu0
  %v179 = vpop.f32.mrb[0].mxu0
  %v180 = vadd.f32 0.0, %v179
  %v181 = vpop.f32.mrb[0].mxu0
  %182 = vmatprep.mubr.bf16.mxu0 0
  %183 = vmatmul.mubr.bf16.gmra.mrb[0].mxu0 %v118
  %v184 = vpop.f32.mrb[0].mxu0
  %v185 = vadd.f32 0.0, %v184
  %v186 = vpop.f32.mrb[0].mxu0
  %v187 = vpop.f32.mrb[0].mxu0
  %v188 = vadd.f32 0.0, %v187
  %v189 = vpop.f32.mrb[0].mxu0
  %190 = vmatprep.mubr.bf16.mxu0 0
  %191 = vmatmul.mubr.bf16.gmra.mrb[0].mxu0 %v121
  %v192 = vpop.f32.mrb[0].mxu0
  %v193 = vadd.f32 0.0, %v192
  %v194 = vpop.f32.mrb[0].mxu0
  %v195 = vpop.f32.mrb[0].mxu0
  %v196 = vadd.f32 0.0, %v195
  %v197 = vpop.f32.mrb[0].mxu0
  %198 = vmatprep.mubr.bf16.mxu0 0
  %199 = vmatmul.mubr.bf16.gmra.mrb[0].mxu0 %v124
  %v200 = vpop.f32.mrb[0].mxu0
  %v201 = vadd.f32 0.0, %v200
  %v202 = vpop.f32.mrb[0].mxu0
  %v203 = vpop.f32.mrb[0].mxu0
  %v204 = vadd.f32 0.0, %v203
  %v205 = vpop.f32.mrb[0].mxu0
  %206 = vmatprep.mubr.bf16.mxu0 0
  %207 = vmatmul.mubr.bf16.gmra.mrb[0].mxu0 %v127
  %v208 = vpop.f32.mrb[0].mxu0
  %v209 = vadd.f32 0.0, %v208
  %v210 = vpop.f32.mrb[0].mxu0
  %v211 = vpop.f32.mrb[0].mxu0
  %v212 = vadd.f32 0.0, %v211
  %v213 = vpop.f32.mrb[0].mxu0
  %214 = vmatprep.mubr.bf16.mxu0 0
  %215 = vmatmul.mubr.bf16.gmra.mrb[0].mxu0 %v130
  %v216 = vpop.f32.mrb[0].mxu0
  %v217 = vadd.f32 0.0, %v216
  %v218 = vpop.f32.mrb[0].mxu0
  %v219 = vpop.f32.mrb[0].mxu0
  %v220 = vadd.f32 0.0, %v219
  %v221 = vpop.f32.mrb[0].mxu0
  %222 = vmatprep.mubr.bf16.mxu0 0
  %223 = vmatmul.mubr.bf16.gmra.mrb[0].mxu0 %v133
  %v224 = vpop.f32.mrb[0].mxu0
  %v225 = vadd.f32 0.0, %v224
  %v226 = vpop.f32.mrb[0].mxu0
  %v227 = vpop.f32.mrb[0].mxu0
  %v228 = vadd.f32 0.0, %v227
  %v229 = vpop.f32.mrb[0].mxu0
  %230 = vmatprep.mubr.bf16.mxu0 0
  %231 = vmatmul.mubr.bf16.gmra.mrb[0].mxu0 %v136
  %v232 = vpop.f32.mrb[0].mxu0
  %v233 = vadd.f32 0.0, %v232
  %v234 = vpop.f32.mrb[0].mxu0
  %v235 = vpop.f32.mrb[0].mxu0
  %v236 = vadd.f32 0.0, %v235
  %v237 = vpop.f32.mrb[0].mxu0
  %238 = vdwg.mxu0
  %v239 = vld [vmem:[%s2] sm:$0x1]
  %v241 = vlaneseq
  %v242 = vshrl.u32 %v241, 7
  %v243 = vsub.s32 0, %v242
  %v244 = vrot.slane %v239, %v243
  %v246 = vmul.f32 %v177, %v244
  %v247 = vmul.f32 %v180, %v244
  %v248 = vmul.f32 %v185, %v244
  %v249 = vmul.f32 %v188, %v244
  %v250 = vmul.f32 %v193, %v244
  %v251 = vmul.f32 %v196, %v244
  %v252 = vmul.f32 %v201, %v244
  %v253 = vmul.f32 %v204, %v244
  %v254 = vmul.f32 %v209, %v244
  %v255 = vmul.f32 %v212, %v244
  %v256 = vmul.f32 %v217, %v244
  %v257 = vmul.f32 %v220, %v244
  %v258 = vmul.f32 %v225, %v244
  %v259 = vmul.f32 %v228, %v244
  %v260 = vmul.f32 %v233, %v244
  %v261 = vmul.f32 %v236, %v244
  %v262 = vld [vmem:[%s3] sm:$0x1]
  %v264 = vlaneseq
  %v265 = vshrl.u32 %v264, 7
  %v266 = vsub.s32 0, %v265
  %v267 = vrot.slane %v262, %v266
  %v269 = vadd.f32 %v246, %v267
  %v270 = vadd.f32 %v247, %v267
  %v271 = vadd.f32 %v248, %v267
  %v272 = vadd.f32 %v249, %v267
  %v273 = vadd.f32 %v250, %v267
  %v274 = vadd.f32 %v251, %v267
  %v275 = vadd.f32 %v252, %v267
  %v276 = vadd.f32 %v253, %v267
  %v277 = vadd.f32 %v254, %v267
  %v278 = vadd.f32 %v255, %v267
  %v279 = vadd.f32 %v256, %v267
  %v280 = vadd.f32 %v257, %v267
  %v281 = vadd.f32 %v258, %v267
  %v282 = vadd.f32 %v259, %v267
  %v283 = vadd.f32 %v260, %v267
  %v284 = vadd.f32 %v261, %v267
  %v285 = vld [vmem:[%s4] sm:$0xff]
  %v286 = vld [vmem:[%s4 + $0x8] sm:$0xff]
  %v287 = vld [vmem:[%s4 + $0x10] sm:$0xff]
  %v288 = vld [vmem:[%s4 + $0x18] sm:$0xff]
  %v289 = vld [vmem:[%s4 + $0x20] sm:$0xff]
  %v290 = vld [vmem:[%s4 + $0x28] sm:$0xff]
  %v291 = vld [vmem:[%s4 + $0x30] sm:$0xff]
  %v292 = vld [vmem:[%s4 + $0x38] sm:$0xff]
  %v293 = vld [vmem:[%s4 + $0x40] sm:$0xff]
  %v294 = vld [vmem:[%s4 + $0x48] sm:$0xff]
  %v295 = vld [vmem:[%s4 + $0x50] sm:$0xff]
  %v296 = vld [vmem:[%s4 + $0x58] sm:$0xff]
  %v297 = vld [vmem:[%s4 + $0x60] sm:$0xff]
  %v298 = vld [vmem:[%s4 + $0x68] sm:$0xff]
  %v299 = vld [vmem:[%s4 + $0x70] sm:$0xff]
  %v300 = vld [vmem:[%s4 + $0x78] sm:$0xff]
  %v301 = vadd.f32 %v269, %v285
  %v302 = vadd.f32 %v270, %v286
  %v303 = vadd.f32 %v271, %v287
  %v304 = vadd.f32 %v272, %v288
  %v305 = vadd.f32 %v273, %v289
  %v306 = vadd.f32 %v274, %v290
  %v307 = vadd.f32 %v275, %v291
  %v308 = vadd.f32 %v276, %v292
  %v309 = vadd.f32 %v277, %v293
  %v310 = vadd.f32 %v278, %v294
  %v311 = vadd.f32 %v279, %v295
  %v312 = vadd.f32 %v280, %v296
  %v313 = vadd.f32 %v281, %v297
  %v314 = vadd.f32 %v282, %v298
  %v315 = vadd.f32 %v283, %v299
  %v316 = vadd.f32 %v284, %v300
  %v317 = vmax.f32 %v301, 0.0
  %v318 = vmax.f32 %v302, 0.0
  %v319 = vmax.f32 %v303, 0.0
  %v320 = vmax.f32 %v304, 0.0
  %v321 = vmax.f32 %v305, 0.0
  %v322 = vmax.f32 %v306, 0.0
  %v323 = vmax.f32 %v307, 0.0
  %v324 = vmax.f32 %v308, 0.0
  %v325 = vmax.f32 %v309, 0.0
  %v326 = vmax.f32 %v310, 0.0
  %v327 = vmax.f32 %v311, 0.0
  %v328 = vmax.f32 %v312, 0.0
  %v329 = vmax.f32 %v313, 0.0
  %v330 = vmax.f32 %v314, 0.0
  %v331 = vmax.f32 %v315, 0.0
  %v332 = vmax.f32 %v316, 0.0
  %vm333 = vcmask 64512
  %334 = vst.msk [vmem:[%s5] sm:$0xff] %vm333, %v317
  %335 = vst.msk [vmem:[%s5 + $0x8] sm:$0xff] %vm333, %v318
  %336 = vst.msk [vmem:[%s5 + $0x10] sm:$0xff] %vm333, %v319
  %337 = vst.msk [vmem:[%s5 + $0x18] sm:$0xff] %vm333, %v320
  %338 = vst.msk [vmem:[%s5 + $0x20] sm:$0xff] %vm333, %v321
  %339 = vst.msk [vmem:[%s5 + $0x28] sm:$0xff] %vm333, %v322
  %340 = vst.msk [vmem:[%s5 + $0x30] sm:$0xff] %vm333, %v323
  %341 = vst.msk [vmem:[%s5 + $0x38] sm:$0xff] %vm333, %v324
  %342 = vst.msk [vmem:[%s5 + $0x40] sm:$0xff] %vm333, %v325
  %343 = vst.msk [vmem:[%s5 + $0x48] sm:$0xff] %vm333, %v326
  %344 = vst.msk [vmem:[%s5 + $0x50] sm:$0xff] %vm333, %v327
  %345 = vst.msk [vmem:[%s5 + $0x58] sm:$0xff] %vm333, %v328
  %346 = vst.msk [vmem:[%s5 + $0x60] sm:$0xff] %vm333, %v329
  %347 = vst.msk [vmem:[%s5 + $0x68] sm:$0xff] %vm333, %v330
  %348 = vst.msk [vmem:[%s5 + $0x70] sm:$0xff] %vm333, %v331
  %349 = vst.msk [vmem:[%s5 + $0x78] sm:$0xff] %vm333, %v332
  // Predicated region
  $region22: #{resnet2_forward.7} parent=0 // pred_check
    _
  $region23: #{resnet2_forward.7} parent=0 // pred_check_branch
    %351 = sbr.rel (0) target = $region25
  $region24: #{resnet2_forward.7} parent=0 // pred_region
    _
  $region25: #{resnet2_forward.7} parent=0 // pred_fallthru
    _
  // Predicated region
  $region26: #{resnet2_forward.7} parent=0 // pred_check
    _
  $region27: #{resnet2_forward.7} parent=0 // pred_check_branch
    %353 = sbr.rel (0) target = $region29
  $region28: #{resnet2_forward.7} parent=0 // pred_region
    _
  $region29: #{resnet2_forward.7} parent=0 // pred_fallthru
    _

</llo_original>
